<compile_context>
chip_gen: v7x
topology: tpu7x:2x2x1
jax: 0.10.0
libtpu: 0.0.40
codegen_flags: <defaults>
</compile_context>

<pallas_src>
import math
import functools

import jax
import jax.numpy as jnp
import numpy as np
from jax import lax
from jax.experimental import pallas as pl
from jax.experimental.pallas import tpu as pltpu


def attention_head_kernel(x_ref, wqkv_ref, bqkv_ref, wo_t_ref, bo_ref,
                          out_ref, qt_s, k_s, vt_s,
                          *, eps, d, hw, qblk, kblk):
    qi = pl.program_id(1)

    # ---- Once per batch element: GroupNorm + fused QKV projection into
    # persistent VMEM scratch.  Transposes hoisted out of all loops. ----
    @pl.when(qi == 0)
    def _project_qkv():
        x = x_ref[0]                                        # (C, HW) f32
        inv_hw = jnp.float32(1.0 / hw)
        mean = jnp.sum(x, axis=1, keepdims=True) * inv_hw           # (C, 1)
        ex2 = jnp.sum(x * x, axis=1, keepdims=True) * inv_hw        # (C, 1)
        var = jnp.maximum(ex2 - mean * mean, 0.0)
        xn = ((x - mean) * lax.rsqrt(var + eps)).astype(jnp.bfloat16)

        # One fused MXU matmul (3D, C) @ (C, HW); gamma/beta and 1/sqrt(D)
        # are already folded into wqkv/bqkv by the wrapper.
        qkv = jnp.dot(wqkv_ref[...], xn,
                      preferred_element_type=jnp.float32) + bqkv_ref[...]
        q = qkv[0 * d:1 * d]                                # (D, HW)
        k = qkv[1 * d:2 * d]                                # (D, HW)
        v = qkv[2 * d:3 * d]                                # (D, HW)
        k_s[...] = k.astype(jnp.bfloat16)                   # keys in lanes
        qt_s[...] = q.T.astype(jnp.bfloat16)                # queries in sublanes
        vt_s[...] = v.T.astype(jnp.bfloat16)                # keys in sublanes

    # ---- Per query block: online softmax over key blocks. ----
    q_off = pl.multiple_of(qi * qblk, qblk)
    q_blk = qt_s[pl.ds(q_off, qblk), :]                     # (qblk, D) bf16

    nkb = hw // kblk
    m0 = jnp.full((qblk, 1), -jnp.inf, jnp.float32)
    l0 = jnp.zeros((qblk, 1), jnp.float32)
    a0 = jnp.zeros((qblk, d), jnp.float32)

    def kv_step(kb, carry):
        m_i, l_i, acc = carry
        k_off = pl.multiple_of(kb * kblk, kblk)
        k_blk = k_s[:, pl.ds(k_off, kblk)]                  # (D, kblk)  bf16
        v_blk = vt_s[pl.ds(k_off, kblk), :]                 # (kblk, D)  bf16
        # scores: natural (qblk, D) @ (D, kblk), bf16 operands / f32 acc.
        s = jnp.dot(q_blk, k_blk, preferred_element_type=jnp.float32)
        m_new = jnp.maximum(m_i, jnp.max(s, axis=-1, keepdims=True))
        alpha = jnp.exp(m_i - m_new)
        p = jnp.exp(s - m_new)                              # fp32 exp (v5e-safe)
        l_new = alpha * l_i + jnp.sum(p, axis=-1, keepdims=True)
        # P @ V: natural (qblk, kblk) @ (kblk, D), bf16 operands / f32 acc.
        acc_new = alpha * acc + jnp.dot(p.astype(jnp.bfloat16), v_blk,
                                        preferred_element_type=jnp.float32)
        return m_new, l_new, acc_new

    unroll = 2 if (nkb > 1 and nkb % 2 == 0) else 1
    m_i, l_i, acc = lax.fori_loop(0, nkb, kv_step, (m0, l0, a0), unroll=unroll)

    attn = acc * pl.reciprocal(l_i, approx=True)            # (qblk, D) f32

    # Output projection, produced transposed (D, qblk) for lane-dense stores.
    out_t = lax.dot_general(wo_t_ref[...], attn.astype(jnp.bfloat16),
                            (((1,), (1,)), ((), ())),
                            preferred_element_type=jnp.float32) + bo_ref[...]
    out_ref[0] = out_t                                      # (D, qblk)


def _pick_blk(hw):
    for b in (512, 256, 128):        # prefer 256-multiples for v6e/v7x MXU
        if hw % b == 0:
            return b
    return hw                        # tiny / odd spatial sizes: single block


def _vmem_limit_bytes():
    try:
        cap = int(pltpu.get_tpu_info().vmem_capacity_bytes)
    except Exception:
        cap = 64 * 1024 * 1024
    # ~3/4 of physical VMEM with a 100 MiB cap: ~96 MiB v5e/v6e, ~48 MiB v7x.
    return int(min(100 * 1024 * 1024, cap * 3 // 4))


def attention_head(x_nchw, params, *, eps=1e-5, qblk=None, kblk=None):
    """x_nchw: (B, C, H, W) float32.  Returns (B, D, H, W) float32."""
    B, C, H, W = x_nchw.shape
    HW = H * W
    D = params["wq"].shape[1]
    scale = 1.0 / math.sqrt(float(D))
    qblk = _pick_blk(HW) if qblk is None else qblk
    kblk = _pick_blk(HW) if kblk is None else kblk
    assert HW % qblk == 0 and HW % kblk == 0
    n_qblk = HW // qblk

    # Token-in-lane layout: NCHW flattens directly to (B, C, HW), no transpose.
    x_tok = x_nchw.reshape(B, C, HW).astype(jnp.float32)

    # Fuse Q/K/V into one (3D, C) weight; fold the 1/sqrt(D) scale into the Q
    # rows and the GroupNorm affine into weight/bias:
    #   W(gamma*xhat + beta) + b == (W*gamma) xhat + (W @ beta + b)
    wqkv = jnp.concatenate([(params["wq"] * scale).T,
                            params["wk"].T,
                            params["wv"].T], axis=0).astype(jnp.float32)   # (3D, C)
    bqkv = jnp.concatenate([params["bq"] * scale,
                            params["bk"],
                            params["bv"]], axis=0).astype(jnp.float32)     # (3D,)
    bqkv = bqkv + wqkv @ params["beta"].astype(jnp.float32)
    wqkv = wqkv * params["gamma"].astype(jnp.float32)[None, :]

    wqkv = wqkv.astype(jnp.bfloat16)                        # MXU-native operand
    bqkv = bqkv.reshape(3 * D, 1)                           # fp32 bias
    wo_t = params["wo"].T.astype(jnp.bfloat16)              # (D_out, D_in)
    bo = params["bo"].reshape(D, 1).astype(jnp.float32)

    def full(shape):
        zeros = (0,) * len(shape)
        return pl.BlockSpec(shape, lambda b, q: zeros)

    kernel = functools.partial(attention_head_kernel, eps=eps, d=D, hw=HW,
                               qblk=qblk, kblk=kblk)

    out_tok = pl.pallas_call(
        kernel,
        out_shape=jax.ShapeDtypeStruct((B, D, HW), jnp.float32),
        grid=(B, n_qblk),
        in_specs=[
            pl.BlockSpec((1, C, HW), lambda b, q: (b, 0, 0)),  # x (resident over q)
            full((3 * D, C)), full((3 * D, 1)),                # fused QKV weight/bias
            full((D, D)), full((D, 1)),                        # wo^T, bo
        ],
        out_specs=pl.BlockSpec((1, D, qblk), lambda b, q: (b, 0, q)),
        scratch_shapes=[
            pltpu.VMEM((HW, D), jnp.bfloat16),   # q^T  (queries in sublanes)
            pltpu.VMEM((D, HW), jnp.bfloat16),   # k    (keys in lanes)
            pltpu.VMEM((HW, D), jnp.bfloat16),   # v^T  (keys in sublanes)
        ],
        compiler_params=pltpu.CompilerParams(
            dimension_semantics=("parallel", "arbitrary"),
            vmem_limit_bytes=_vmem_limit_bytes()),
    )(x_tok, wqkv, bqkv, wo_t, bo)

    # (B, D, HW) is already channel-major: reshape straight to NCHW output.
    return out_tok.reshape(B, D, H, W)


def reference_attention_head(x_nchw, params, *, eps=1e-5):
    """Pure-JAX fp32 reference mirroring the PyTorch forward."""
    B, C, H, W = x_nchw.shape
    D = params["wq"].shape[1]
    mean = jnp.mean(x_nchw, axis=(2, 3), keepdims=True)
    var = jnp.mean((x_nchw - mean) ** 2, axis=(2, 3), keepdims=True)
    xn = (x_nchw - mean) / jnp.sqrt(var + eps)
    xn = xn * params["gamma"][None, :, None, None] + params["beta"][None, :, None, None]

    def conv1x1(x, w, b):  # w: (Cin, Cout)
        return jnp.einsum("bchw,cd->bdhw", x, w) + b[None, :, None, None]

    Q = conv1x1(xn, params["wq"], params["bq"]).reshape(B, D, -1)
    K = conv1x1(xn, params["wk"], params["bk"]).reshape(B, D, -1)
    V = conv1x1(xn, params["wv"], params["bv"]).reshape(B, D, -1)
    aff = jnp.einsum("bdn,bdm->bnm", Q, K) / jnp.sqrt(jnp.float32(D))
    aff = jax.nn.softmax(aff, axis=2)
    attn = jnp.einsum("bnm,bdm->bnd", aff, V)               # (B, HW, D)
    attn = jnp.transpose(attn, (0, 2, 1)).reshape(B, D, H, W)
    return conv1x1(attn, params["wo"], params["bo"])


if __name__ == "__main__":
    B, C, H, W = 2, 4, 16, 16
    D = 8  # value_channels

    key = jax.random.PRNGKey(0)
    ks = jax.random.split(key, 11)
    params = {
        "gamma": 1.0 + 0.1 * jax.random.normal(ks[9], (C,), jnp.float32),
        "beta": 0.1 * jax.random.normal(ks[10], (C,), jnp.float32),
        # conv weights stored as (Cin, Cout) for the matmul formulation
        "wq": 0.1 * jax.random.normal(ks[0], (C, D), jnp.float32),
        "bq": 0.1 * jax.random.normal(ks[1], (D,), jnp.float32),
        "wk": 0.1 * jax.random.normal(ks[2], (C, D), jnp.float32),
        "bk": 0.1 * jax.random.normal(ks[3], (D,), jnp.float32),
        "wv": 0.1 * jax.random.normal(ks[4], (C, D), jnp.float32),
        "bv": 0.1 * jax.random.normal(ks[5], (D,), jnp.float32),
        "wo": 0.1 * jax.random.normal(ks[6], (D, D), jnp.float32),
        "bo": 0.1 * jax.random.normal(ks[7], (D,), jnp.float32),
    }
    x = jax.random.normal(ks[8], (B, C, H, W), jnp.float32)

    # Force qblk=kblk=128 so the small demo (HW=256) exercises both the
    # multi-q-block grid axis and the multi-key-block online-softmax path.
    out = jax.block_until_ready(attention_head(x, params, qblk=128, kblk=128))
    ref = jax.block_until_ready(reference_attention_head(x, params))

    # bf16 MXU operands + approx reciprocal => relaxed (but tight) tolerance.
    np.testing.assert_allclose(np.asarray(out), np.asarray(ref),
                               rtol=2e-2, atol=5e-3)
    print("KERNEL_OK")
</pallas_src>

<mosaic_0001>
module attributes {stable_mosaic.version = 11 : i64} {
  func.func @attention_head_kernel(%arg0: i32, %arg1: i32, %arg2: memref<1x4x256xf32, #tpu.memory_space<vmem>>, %arg3: memref<24x4xbf16, #tpu.memory_space<vmem>>, %arg4: memref<24x1xf32, #tpu.memory_space<vmem>>, %arg5: memref<8x8xbf16, #tpu.memory_space<vmem>>, %arg6: memref<8x1xf32, #tpu.memory_space<vmem>>, %arg7: memref<1x8x128xf32, #tpu.memory_space<vmem>>, %arg8: memref<256x8xbf16, #tpu.memory_space<vmem>>, %arg9: memref<8x256xbf16, #tpu.memory_space<vmem>>, %arg10: memref<256x8xbf16, #tpu.memory_space<vmem>>) attributes {dimension_semantics = [#tpu.dimension_semantics<parallel>, #tpu.dimension_semantics<arbitrary>], iteration_bounds = array<i64: 2, 2>, scalar_prefetch = 0 : i64, scratch_operands = 3 : i64, tpu.core_type = #tpu.core_type<tc>, window_params = [{transform_indices = @transform_0, window_bounds = array<i64: 1, 4, 256>}, {pipeline_mode = #tpu.pipeline_mode<synchronous>, transform_indices = @transform_1, window_bounds = array<i64: 24, 4>}, {pipeline_mode = #tpu.pipeline_mode<synchronous>, transform_indices = @transform_2, window_bounds = array<i64: 24, 1>}, {pipeline_mode = #tpu.pipeline_mode<synchronous>, transform_indices = @transform_3, window_bounds = array<i64: 8, 8>}, {pipeline_mode = #tpu.pipeline_mode<synchronous>, transform_indices = @transform_4, window_bounds = array<i64: 8, 1>}, {transform_indices = @transform_5, window_bounds = array<i64: 1, 8, 128>}]} {
    %c0_i32 = arith.constant 0 : i32
    %0 = arith.cmpi eq, %arg1, %c0_i32 : i32
    %1 = arith.extui %0 : i1 to i32
    %c0_i32_0 = arith.constant 0 : i32
    %2 = arith.cmpi ne, %1, %c0_i32_0 : i32
    scf.if %2 {
      %c0_26 = arith.constant 0 : index
      %c0_27 = arith.constant 0 : index
      %c0_28 = arith.constant 0 : index
      %70 = vector.load %arg2[%c0_26, %c0_27, %c0_28] : memref<1x4x256xf32, #tpu.memory_space<vmem>>, vector<1x4x256xf32>
      %71 = vector.shape_cast %70 : vector<1x4x256xf32> to vector<4x256xf32>
      %cst_29 = arith.constant dense<0.000000e+00> : vector<4xf32>
      %72 = vector.multi_reduction <add>, %71, %cst_29 [1] : vector<4x256xf32> to vector<4xf32>
      %73 = vector.shape_cast %72 : vector<4xf32> to vector<4x1xf32>
      %cst_30 = arith.constant 3.906250e-03 : f32
      %74 = vector.broadcast %cst_30 : f32 to vector<4x1xf32>
      %75 = arith.mulf %73, %74 : vector<4x1xf32>
      %76 = arith.mulf %71, %71 : vector<4x256xf32>
      %cst_31 = arith.constant dense<0.000000e+00> : vector<4xf32>
      %77 = vector.multi_reduction <add>, %76, %cst_31 [1] : vector<4x256xf32> to vector<4xf32>
      %78 = vector.shape_cast %77 : vector<4xf32> to vector<4x1xf32>
      %cst_32 = arith.constant 3.906250e-03 : f32
      %79 = vector.broadcast %cst_32 : f32 to vector<4x1xf32>
      %80 = arith.mulf %78, %79 : vector<4x1xf32>
      %81 = arith.mulf %75, %75 : vector<4x1xf32>
      %82 = arith.subf %80, %81 : vector<4x1xf32>
      %cst_33 = arith.constant 0.000000e+00 : f32
      %83 = vector.broadcast %cst_33 : f32 to vector<4x1xf32>
      %84 = arith.maximumf %82, %83 : vector<4x1xf32>
      %85 = vector.broadcast %75 : vector<4x1xf32> to vector<4x256xf32>
      %86 = arith.subf %71, %85 : vector<4x256xf32>
      %cst_34 = arith.constant 9.99999974E-6 : f32
      %87 = vector.broadcast %cst_34 : f32 to vector<4x1xf32>
      %88 = arith.addf %84, %87 : vector<4x1xf32>
      %89 = math.rsqrt %88 : vector<4x1xf32>
      %90 = vector.broadcast %89 : vector<4x1xf32> to vector<4x256xf32>
      %91 = arith.mulf %86, %90 : vector<4x256xf32>
      %92 = arith.truncf %91 : vector<4x256xf32> to vector<4x256xbf16>
      %c0_35 = arith.constant 0 : index
      %c0_36 = arith.constant 0 : index
      %93 = vector.load %arg3[%c0_35, %c0_36] : memref<24x4xbf16, #tpu.memory_space<vmem>>, vector<24x4xbf16>
      %cst_37 = arith.constant dense<0.000000e+00> : vector<24x256xf32>
      %94 = tpu.matmul %93, %92, %cst_37 {dimension_numbers = #tpu.dot_dimension_numbers<[1], [0], [0], [1], [0, 0, 1, 1], [], []>} : vector<24x4xbf16>, vector<4x256xbf16>, vector<24x256xf32> -> vector<24x256xf32>
      %c0_38 = arith.constant 0 : index
      %c0_39 = arith.constant 0 : index
      %95 = vector.load %arg4[%c0_38, %c0_39] : memref<24x1xf32, #tpu.memory_space<vmem>>, vector<24x1xf32>
      %96 = vector.broadcast %95 : vector<24x1xf32> to vector<24x256xf32>
      %97 = arith.addf %94, %96 : vector<24x256xf32>
      %98 = vector.extract_strided_slice %97 {offsets = [0, 0], sizes = [8, 256], strides = [1, 1]} : vector<24x256xf32> to vector<8x256xf32>
      %99 = vector.extract_strided_slice %97 {offsets = [8, 0], sizes = [8, 256], strides = [1, 1]} : vector<24x256xf32> to vector<8x256xf32>
      %100 = vector.extract_strided_slice %97 {offsets = [16, 0], sizes = [8, 256], strides = [1, 1]} : vector<24x256xf32> to vector<8x256xf32>
      %101 = arith.truncf %99 : vector<8x256xf32> to vector<8x256xbf16>
      %c0_40 = arith.constant 0 : index
      %c0_41 = arith.constant 0 : index
      %102 = vector.load %arg9[%c0_40, %c0_41] : memref<8x256xbf16, #tpu.memory_space<vmem>>, vector<8x256xbf16>
      tpu.vector_store %arg9[%c0_40, %c0_41], %101 {strides = array<i32>} : memref<8x256xbf16, #tpu.memory_space<vmem>>, vector<8x256xbf16>,
      %103 = tpu.transpose %98, [1, 0] : vector<8x256xf32> -> vector<256x8xf32>
      %104 = arith.truncf %103 : vector<256x8xf32> to vector<256x8xbf16>
      %c0_42 = arith.constant 0 : index
      %c0_43 = arith.constant 0 : index
      %105 = vector.load %arg8[%c0_42, %c0_43] : memref<256x8xbf16, #tpu.memory_space<vmem>>, vector<256x8xbf16>
      tpu.vector_store %arg8[%c0_42, %c0_43], %104 {strides = array<i32>} : memref<256x8xbf16, #tpu.memory_space<vmem>>, vector<256x8xbf16>,
      %106 = tpu.transpose %100, [1, 0] : vector<8x256xf32> -> vector<256x8xf32>
      %107 = arith.truncf %106 : vector<256x8xf32> to vector<256x8xbf16>
      %c0_44 = arith.constant 0 : index
      %c0_45 = arith.constant 0 : index
      %108 = vector.load %arg10[%c0_44, %c0_45] : memref<256x8xbf16, #tpu.memory_space<vmem>>, vector<256x8xbf16>
      tpu.vector_store %arg10[%c0_44, %c0_45], %107 {strides = array<i32>} : memref<256x8xbf16, #tpu.memory_space<vmem>>, vector<256x8xbf16>,
    } else {
    }
    %c128_i32 = arith.constant 128 : i32
    %3 = arith.muli %arg1, %c128_i32 : i32
    %4 = tpu.assume_multiple %3, 128 : i32
    %5 = arith.index_cast %4 : i32 to index
    %c0 = arith.constant 0 : index
    %6 = vector.load %arg8[%5, %c0] : memref<256x8xbf16, #tpu.memory_space<vmem>>, vector<128x8xbf16>
    %cst = arith.constant 0xFF800000 : f32
    %7 = vector.broadcast %cst : f32 to vector<128x1xf32>
    %cst_1 = arith.constant 0.000000e+00 : f32
    %8 = vector.broadcast %cst_1 : f32 to vector<128x1xf32>
    %cst_2 = arith.constant 0.000000e+00 : f32
    %9 = vector.broadcast %cst_2 : f32 to vector<128x8xf32>
    %c0_i32_3 = arith.constant 0 : i32
    %c128_i32_4 = arith.constant 128 : i32
    %10 = arith.muli %c0_i32_3, %c128_i32_4 : i32
    %11 = tpu.assume_multiple %10, 128 : i32
    %c0_5 = arith.constant 0 : index
    %12 = arith.index_cast %11 : i32 to index
    %13 = vector.load %arg9[%c0_5, %12] : memref<8x256xbf16, #tpu.memory_space<vmem>>, vector<8x128xbf16>
    %14 = arith.index_cast %11 : i32 to index
    %c0_6 = arith.constant 0 : index
    %15 = vector.load %arg10[%14, %c0_6] : memref<256x8xbf16, #tpu.memory_space<vmem>>, vector<128x8xbf16>
    %cst_7 = arith.constant dense<0.000000e+00> : vector<128x128xf32>
    %16 = tpu.matmul %6, %13, %cst_7 {dimension_numbers = #tpu.dot_dimension_numbers<[1], [0], [0], [1], [0, 0, 1, 1], [], []>} : vector<128x8xbf16>, vector<8x128xbf16>, vector<128x128xf32> -> vector<128x128xf32>
    %cst_8 = arith.constant dense<0xFF800000> : vector<128xf32>
    %17 = vector.multi_reduction <maximumf>, %16, %cst_8 [1] : vector<128x128xf32> to vector<128xf32>
    %18 = vector.shape_cast %17 : vector<128xf32> to vector<128x1xf32>
    %19 = arith.maximumf %7, %18 : vector<128x1xf32>
    %20 = arith.subf %7, %19 : vector<128x1xf32>
    %21 = math.exp %20 : vector<128x1xf32>
    %22 = vector.broadcast %19 : vector<128x1xf32> to vector<128x128xf32>
    %23 = arith.subf %16, %22 : vector<128x128xf32>
    %24 = math.exp %23 : vector<128x128xf32>
    %25 = arith.mulf %21, %8 : vector<128x1xf32>
    %cst_9 = arith.constant dense<0.000000e+00> : vector<128xf32>
    %26 = vector.multi_reduction <add>, %24, %cst_9 [1] : vector<128x128xf32> to vector<128xf32>
    %27 = vector.shape_cast %26 : vector<128xf32> to vector<128x1xf32>
    %28 = arith.addf %25, %27 : vector<128x1xf32>
    %29 = vector.broadcast %21 : vector<128x1xf32> to vector<128x8xf32>
    %30 = arith.mulf %29, %9 : vector<128x8xf32>
    %31 = arith.truncf %24 : vector<128x128xf32> to vector<128x128xbf16>
    %cst_10 = arith.constant dense<0.000000e+00> : vector<128x8xf32>
    %32 = tpu.matmul %31, %15, %cst_10 {dimension_numbers = #tpu.dot_dimension_numbers<[1], [0], [0], [1], [0, 0, 1, 1], [], []>} : vector<128x128xbf16>, vector<128x8xbf16>, vector<128x8xf32> -> vector<128x8xf32>
    %33 = arith.addf %30, %32 : vector<128x8xf32>
    %c1_i32 = arith.constant 1 : i32
    %c128_i32_11 = arith.constant 128 : i32
    %34 = arith.muli %c1_i32, %c128_i32_11 : i32
    %35 = tpu.assume_multiple %34, 128 : i32
    %c0_12 = arith.constant 0 : index
    %36 = arith.index_cast %35 : i32 to index
    %37 = vector.load %arg9[%c0_12, %36] : memref<8x256xbf16, #tpu.memory_space<vmem>>, vector<8x128xbf16>
    %38 = arith.index_cast %35 : i32 to index
    %c0_13 = arith.constant 0 : index
    %39 = vector.load %arg10[%38, %c0_13] : memref<256x8xbf16, #tpu.memory_space<vmem>>, vector<128x8xbf16>
    %cst_14 = arith.constant dense<0.000000e+00> : vector<128x128xf32>
    %40 = tpu.matmul %6, %37, %cst_14 {dimension_numbers = #tpu.dot_dimension_numbers<[1], [0], [0], [1], [0, 0, 1, 1], [], []>} : vector<128x8xbf16>, vector<8x128xbf16>, vector<128x128xf32> -> vector<128x128xf32>
    %cst_15 = arith.constant dense<0xFF800000> : vector<128xf32>
    %41 = vector.multi_reduction <maximumf>, %40, %cst_15 [1] : vector<128x128xf32> to vector<128xf32>
    %42 = vector.shape_cast %41 : vector<128xf32> to vector<128x1xf32>
    %43 = arith.maximumf %19, %42 : vector<128x1xf32>
    %44 = arith.subf %19, %43 : vector<128x1xf32>
    %45 = math.exp %44 : vector<128x1xf32>
    %46 = vector.broadcast %43 : vector<128x1xf32> to vector<128x128xf32>
    %47 = arith.subf %40, %46 : vector<128x128xf32>
    %48 = math.exp %47 : vector<128x128xf32>
    %49 = arith.mulf %45, %28 : vector<128x1xf32>
    %cst_16 = arith.constant dense<0.000000e+00> : vector<128xf32>
    %50 = vector.multi_reduction <add>, %48, %cst_16 [1] : vector<128x128xf32> to vector<128xf32>
    %51 = vector.shape_cast %50 : vector<128xf32> to vector<128x1xf32>
    %52 = arith.addf %49, %51 : vector<128x1xf32>
    %53 = vector.broadcast %45 : vector<128x1xf32> to vector<128x8xf32>
    %54 = arith.mulf %53, %33 : vector<128x8xf32>
    %55 = arith.truncf %48 : vector<128x128xf32> to vector<128x128xbf16>
    %cst_17 = arith.constant dense<0.000000e+00> : vector<128x8xf32>
    %56 = tpu.matmul %55, %39, %cst_17 {dimension_numbers = #tpu.dot_dimension_numbers<[1], [0], [0], [1], [0, 0, 1, 1], [], []>} : vector<128x128xbf16>, vector<128x8xbf16>, vector<128x8xf32> -> vector<128x8xf32>
    %57 = arith.addf %54, %56 : vector<128x8xf32>
    %c2_i32 = arith.constant 2 : i32
    %58 = tpu.reciprocal %52 {approx = true} : vector<128x1xf32> -> vector<128x1xf32>
    %59 = vector.broadcast %58 : vector<128x1xf32> to vector<128x8xf32>
    %60 = arith.mulf %57, %59 : vector<128x8xf32>
    %c0_18 = arith.constant 0 : index
    %c0_19 = arith.constant 0 : index
    %61 = vector.load %arg5[%c0_18, %c0_19] : memref<8x8xbf16, #tpu.memory_space<vmem>>, vector<8x8xbf16>
    %62 = arith.truncf %60 : vector<128x8xf32> to vector<128x8xbf16>
    %cst_20 = arith.constant dense<0.000000e+00> : vector<8x128xf32>
    %63 = tpu.matmul %61, %62, %cst_20 {dimension_numbers = #tpu.dot_dimension_numbers<[1], [1], [0], [0], [0, 0, 1, 0], [], []>} : vector<8x8xbf16>, vector<128x8xbf16>, vector<8x128xf32> -> vector<8x128xf32>
    %c0_21 = arith.constant 0 : index
    %c0_22 = arith.constant 0 : index
    %64 = vector.load %arg6[%c0_21, %c0_22] : memref<8x1xf32, #tpu.memory_space<vmem>>, vector<8x1xf32>
    %65 = vector.broadcast %64 : vector<8x1xf32> to vector<8x128xf32>
    %66 = arith.addf %63, %65 : vector<8x128xf32>
    %c0_23 = arith.constant 0 : index
    %c0_24 = arith.constant 0 : index
    %c0_25 = arith.constant 0 : index
    %67 = vector.load %arg7[%c0_23, %c0_24, %c0_25] : memref<1x8x128xf32, #tpu.memory_space<vmem>>, vector<1x8x128xf32>
    %68 = vector.shape_cast %67 : vector<1x8x128xf32> to vector<8x128xf32>
    %69 = vector.shape_cast %66 : vector<8x128xf32> to vector<1x8x128xf32>
    tpu.vector_store %arg7[%c0_23, %c0_24, %c0_25], %69 {strides = array<i32>} : memref<1x8x128xf32, #tpu.memory_space<vmem>>, vector<1x8x128xf32>,
    return
  }
  func.func @transform_0(%arg0: i32, %arg1: i32) -> (i32, i32, i32) {
    %c0_i32 = arith.constant 0 : i32
    %c0_i32_0 = arith.constant 0 : i32
    %c0_i32_1 = arith.constant 0 : i32
    return %arg0, %c0_i32, %c0_i32_0 : i32, i32, i32
  }
  func.func @transform_1(%arg0: i32, %arg1: i32) -> (i32, i32) {
    %c0_i32 = arith.constant 0 : i32
    %c0_i32_0 = arith.constant 0 : i32
    %c0_i32_1 = arith.constant 0 : i32
    return %c0_i32, %c0_i32_0 : i32, i32
  }
  func.func @transform_2(%arg0: i32, %arg1: i32) -> (i32, i32) {
    %c0_i32 = arith.constant 0 : i32
    %c0_i32_0 = arith.constant 0 : i32
    %c0_i32_1 = arith.constant 0 : i32
    return %c0_i32, %c0_i32_0 : i32, i32
  }
  func.func @transform_3(%arg0: i32, %arg1: i32) -> (i32, i32) {
    %c0_i32 = arith.constant 0 : i32
    %c0_i32_0 = arith.constant 0 : i32
    %c0_i32_1 = arith.constant 0 : i32
    return %c0_i32, %c0_i32_0 : i32, i32
  }
  func.func @transform_4(%arg0: i32, %arg1: i32) -> (i32, i32) {
    %c0_i32 = arith.constant 0 : i32
    %c0_i32_0 = arith.constant 0 : i32
    %c0_i32_1 = arith.constant 0 : i32
    return %c0_i32, %c0_i32_0 : i32, i32
  }
  func.func @transform_5(%arg0: i32, %arg1: i32) -> (i32, i32, i32) {
    %c0_i32 = arith.constant 0 : i32
    %c0_i32_0 = arith.constant 0 : i32
    return %arg0, %c0_i32, %arg1 : i32, i32, i32
  }
}

</mosaic_0001>

<llo_original>
// kernel: tpu_custom_call.1
$region0: #{tpu_custom_call.1}
  #allocation0 [shape = 'u32[]', space=smem, size = 0x4, offset = 0x4, fixed_abs, tag = 'smem constant byte address 0x4 - core index']
  #allocation1 [shape = 'u32[144,128]{1,0:T(1,128)}', space=vmem, size = 0x12000, scoped, tag = 'internal scratch']
  #allocation2 [shape = 'bf16[256,8]{1,0:T(16,128)(2,1)}', space=vmem, size = 0x10000, scoped, tag = 'scratch operand']
  #allocation3 [shape = 'bf16[8,256]{1,0:T(8,128)(2,1)}', space=vmem, size = 0x1000, scoped, tag = 'scratch operand']
  #allocation4 [shape = 'bf16[256,8]{1,0:T(16,128)(2,1)}', space=vmem, size = 0x10000, scoped, tag = 'scratch operand']
  %s0 = inlined_call_operand.vmem [shape: f32[2,4,256], index: 0, kind: input, shape index: {}]
  %s1 = inlined_call_operand.vmem [shape: bf16[24,4], index: 1, kind: input, shape index: {}]
  %s2 = inlined_call_operand.vmem [shape: f32[24,1], index: 2, kind: input, shape index: {}]
  %s3 = inlined_call_operand.vmem [shape: bf16[8,8], index: 3, kind: input, shape index: {}]
  %s4 = inlined_call_operand.vmem [shape: f32[8,1], index: 4, kind: input, shape index: {}]
  %s5 = inlined_call_operand.hbm [shape: f32[2,8,256], index: 5, kind: output, shape index: {}]
  %s6 = sld [smem:[#allocation0]]
  $region57: #{tpu_custom_call.1} parent=0
    _
  %s8 = ssub.s32 1, %s6
  %s9 = scalar_select 0, %s8, %s6
  $region1: #{tpu_custom_call.1} parent=0
    #allocation5 [shape = 'u8[8192]{0}', space=vmem, size = 0x2000, scoped, tag = 'output window, operand 0']
    #allocation6 [shape = 's32[2]{0}', space=sflag, size = 0x8, scoped, tag = 'scoped memory for tpu_custom_call.1']
    %10 = vsyncpa [#allocation6], 0
    %s11 = scalar_lea.sflag [#allocation6], 1
    %12 = vsyncpa %s11, 0
    loop: start=0, step=1, limit=6
    $region2: #{tpu_custom_call.1} parent=1 // loop_pre_header
      _
    $region3: #{tpu_custom_call.1} parent=1 // loop_header
      %s14 = sphi 0, %s18
      %p15 = scmp.ge.s32.totalorder %s14, 6
      %s21 = sphi 0, %s33
      %s22 = sphi 0, %s29
      %s23 = sphi 0, %s21
      %s24 = sphi 0, %s22
      %s25 = sphi 0, %s23
      %s26 = sphi 0, %s24
      %s36 = sphi 0, %s38
      %s39 = sphi 0, %s36
      %s40 = sphi 0, %s39
      %s56 = sphi 0, %s40
      %s60 = sphi 0, %s60
      %s62 = sphi 0, %s60
      %s63 = sphi 0, %s62
      %s77 = sphi 0, %s63
      %s81 = sphi 0, %s81
      %s83 = sphi 0, %s81
      %s84 = sphi 0, %s83
      %s98 = sphi 0, %s84
      %s102 = sphi 0, %s102
      %s104 = sphi 0, %s102
      %s105 = sphi 0, %s104
      %s119 = sphi 0, %s105
      %s123 = sphi 0, %s123
      %s125 = sphi 0, %s123
      %s126 = sphi 0, %s125
      %s140 = sphi 0, %s126
      %s148 = sphi 0, %s150
      %s151 = sphi 0, %s148
      %s152 = sphi 0, %s151
      %s168 = sphi 0, %s152
    $region4: #{tpu_custom_call.1} parent=1 // loop_header_branch
      %17 = sbr.rel (%p15) target = $region8
    $region5: #{tpu_custom_call.1} parent=1 // loop_body
      %s19 = ssub.s32 %s14, 1
      %s20 = ssub.s32 %s14, 2
      %s27 = sadd.s32 1, %s22
      %p28 = scmp.ge.s32.totalorder %s27, 2
      %s29 = scalar_select %p28, 0, %s27
      %s30 = sadd.s32 1, %s21
      %s31 = scalar_select %p28, %s30, %s21
      %p32 = scmp.ge.s32.totalorder %s31, 2
      %s33 = scalar_select %p32, 0, %s31
      %s34 = ssub.s32 %s21, %s33
      %p35 = scmp.eq.s32.totalorder %s34, 0
      %s37 = sadd.s32 %s36, 1
      %s38 = scalar_select %p35, %s36, %s37
      %p41 = pneg %p35
      %p42 = scmp.eq.s32.totalorder %s14, 3
      %p43 = por %p41, %p42
      %p44 = scmp.ne.s32.totalorder %s36, %s39
      %p45 = scmp.eq.s32.totalorder %s14, 0
      %p46 = por %p44, %p45
      %p47 = scmp.ne.s32.totalorder %s36, %s39
      %p48 = scmp.eq.s32.totalorder %s19, 3
      %p49 = por %p47, %p48
      %p50 = scmp.ne.s32.totalorder %s39, %s40
      %p51 = scmp.eq.s32.totalorder %s19, 0
      %p52 = por %p50, %p51
      %p53 = scmp.ne.s32.totalorder %s39, %s40
      %p54 = scmp.eq.s32.totalorder %s20, 3
      %p55 = por %p53, %p54
      %p57 = scmp.ne.s32.totalorder %s40, %s56
      %p58 = scmp.eq.s32.totalorder %s20, 0
      %p59 = por %p57, %p58
      %s61 = sadd.s32 %s60, 1
      %p64 = scmp.eq.s32.totalorder %s14, 3
      %p65 = scmp.ne.s32.totalorder %s60, %s62
      %p66 = scmp.eq.s32.totalorder %s14, 0
      %p67 = por %p65, %p66
      %p68 = scmp.ne.s32.totalorder %s60, %s62
      %p69 = scmp.eq.s32.totalorder %s19, 3
      %p70 = por %p68, %p69
      %p71 = scmp.ne.s32.totalorder %s62, %s63
      %p72 = scmp.eq.s32.totalorder %s19, 0
      %p73 = por %p71, %p72
      %p74 = scmp.ne.s32.totalorder %s62, %s63
      %p75 = scmp.eq.s32.totalorder %s20, 3
      %p76 = por %p74, %p75
      %p78 = scmp.ne.s32.totalorder %s63, %s77
      %p79 = scmp.eq.s32.totalorder %s20, 0
      %p80 = por %p78, %p79
      %s82 = sadd.s32 %s81, 1
      %p85 = scmp.eq.s32.totalorder %s14, 3
      %p86 = scmp.ne.s32.totalorder %s81, %s83
      %p87 = scmp.eq.s32.totalorder %s14, 0
      %p88 = por %p86, %p87
      %p89 = scmp.ne.s32.totalorder %s81, %s83
      %p90 = scmp.eq.s32.totalorder %s19, 3
      %p91 = por %p89, %p90
      %p92 = scmp.ne.s32.totalorder %s83, %s84
      %p93 = scmp.eq.s32.totalorder %s19, 0
      %p94 = por %p92, %p93
      %p95 = scmp.ne.s32.totalorder %s83, %s84
      %p96 = scmp.eq.s32.totalorder %s20, 3
      %p97 = por %p95, %p96
      %p99 = scmp.ne.s32.totalorder %s84, %s98
      %p100 = scmp.eq.s32.totalorder %s20, 0
      %p101 = por %p99, %p100
      %s103 = sadd.s32 %s102, 1
      %p106 = scmp.eq.s32.totalorder %s14, 3
      %p107 = scmp.ne.s32.totalorder %s102, %s104
      %p108 = scmp.eq.s32.totalorder %s14, 0
      %p109 = por %p107, %p108
      %p110 = scmp.ne.s32.totalorder %s102, %s104
      %p111 = scmp.eq.s32.totalorder %s19, 3
      %p112 = por %p110, %p111
      %p113 = scmp.ne.s32.totalorder %s104, %s105
      %p114 = scmp.eq.s32.totalorder %s19, 0
      %p115 = por %p113, %p114
      %p116 = scmp.ne.s32.totalorder %s104, %s105
      %p117 = scmp.eq.s32.totalorder %s20, 3
      %p118 = por %p116, %p117
      %p120 = scmp.ne.s32.totalorder %s105, %s119
      %p121 = scmp.eq.s32.totalorder %s20, 0
      %p122 = por %p120, %p121
      %s124 = sadd.s32 %s123, 1
      %p127 = scmp.eq.s32.totalorder %s14, 3
      %p128 = scmp.ne.s32.totalorder %s123, %s125
      %p129 = scmp.eq.s32.totalorder %s14, 0
      %p130 = por %p128, %p129
      %p131 = scmp.ne.s32.totalorder %s123, %s125
      %p132 = scmp.eq.s32.totalorder %s19, 3
      %p133 = por %p131, %p132
      %p134 = scmp.ne.s32.totalorder %s125, %s126
      %p135 = scmp.eq.s32.totalorder %s19, 0
      %p136 = por %p134, %p135
      %p137 = scmp.ne.s32.totalorder %s125, %s126
      %p138 = scmp.eq.s32.totalorder %s20, 3
      %p139 = por %p137, %p138
      %p141 = scmp.ne.s32.totalorder %s126, %s140
      %p142 = scmp.eq.s32.totalorder %s20, 0
      %p143 = por %p141, %p142
      %s144 = ssub.s32 %s21, %s33
      %s145 = ssub.s32 %s22, %s29
      %s146 = sor.u32 %s144, %s145
      %p147 = scmp.eq.s32.totalorder %s146, 0
      %s149 = sadd.s32 %s148, 1
      %s150 = scalar_select %p147, %s148, %s149
      %p153 = pneg %p147
      %p154 = scmp.eq.s32.totalorder %s14, 3
      %p155 = por %p153, %p154
      %p156 = scmp.ne.s32.totalorder %s148, %s151
      %p157 = scmp.eq.s32.totalorder %s14, 0
      %p158 = por %p156, %p157
      %p159 = scmp.ne.s32.totalorder %s148, %s151
      %p160 = scmp.eq.s32.totalorder %s19, 3
      %p161 = por %p159, %p160
      %p162 = scmp.ne.s32.totalorder %s151, %s152
      %p163 = scmp.eq.s32.totalorder %s19, 0
      %p164 = por %p162, %p163
      %p165 = scmp.ne.s32.totalorder %s151, %s152
      %p166 = scmp.eq.s32.totalorder %s20, 3
      %p167 = por %p165, %p166
      %p169 = scmp.ne.s32.totalorder %s152, %s168
      %p170 = scmp.eq.s32.totalorder %s20, 0
      %p171 = por %p169, %p170
      %p172 = scmp.le.s32.totalorder 1, %s14
      %p173 = scmp.lt.s32.totalorder %s14, 5
      %p174 = pnand %p172, %p173
      %p175 = pneg %p174
      // Predicated region
      $region9: #{tpu_custom_call.1} parent=5 // pred_check
        _
      $region10: #{tpu_custom_call.1} parent=5 // pred_check_branch
        %177 = sbr.rel (%p174) target = $region12
      $region11: #{tpu_custom_call.1} parent=5 // pred_region
        %s178 = ssub.s32 %s14, 1
        // Predicated region
        $region13: #{tpu_custom_call.1} parent=11 // pred_check
          %p179 = pneg %p73
        $region14: #{tpu_custom_call.1} parent=11 // pred_check_branch
          %181 = sbr.rel (%p179) target = $region16
        $region15: #{tpu_custom_call.1} parent=11 // pred_region
          _
        $region16: #{tpu_custom_call.1} parent=11 // pred_fallthru
          _
        // Predicated region
        $region17: #{tpu_custom_call.1} parent=11 // pred_check
          %p182 = pneg %p94
        $region18: #{tpu_custom_call.1} parent=11 // pred_check_branch
          %184 = sbr.rel (%p182) target = $region20
        $region19: #{tpu_custom_call.1} parent=11 // pred_region
          _
        $region20: #{tpu_custom_call.1} parent=11 // pred_fallthru
          _
        // Predicated region
        $region21: #{tpu_custom_call.1} parent=11 // pred_check
          %p185 = pneg %p115
        $region22: #{tpu_custom_call.1} parent=11 // pred_check_branch
          %187 = sbr.rel (%p185) target = $region24
        $region23: #{tpu_custom_call.1} parent=11 // pred_region
          _
        $region24: #{tpu_custom_call.1} parent=11 // pred_fallthru
          _
        // Predicated region
        $region25: #{tpu_custom_call.1} parent=11 // pred_check
          %p188 = pneg %p136
        $region26: #{tpu_custom_call.1} parent=11 // pred_check_branch
          %190 = sbr.rel (%p188) target = $region28
        $region27: #{tpu_custom_call.1} parent=11 // pred_region
          _
        $region28: #{tpu_custom_call.1} parent=11 // pred_fallthru
          _
      $region12: #{tpu_custom_call.1} parent=5 // pred_fallthru
        _
      %p191 = scmp.lt.s32.totalorder %s14, 4
      // Predicated region
      $region29: #{tpu_custom_call.1} parent=5 // pred_check
        %p192 = pneg %p191
      $region30: #{tpu_custom_call.1} parent=5 // pred_check_branch
        %194 = sbr.rel (%p192) target = $region32
      $region31: #{tpu_custom_call.1} parent=5 // pred_region
        // Predicated region
        $region33: #{tpu_custom_call.1} parent=31 // pred_check
          %p195 = pneg %p46
        $region34: #{tpu_custom_call.1} parent=31 // pred_check_branch
          %197 = sbr.rel (%p195) target = $region36
        $region35: #{tpu_custom_call.1} parent=31 // pred_region
          %p198 = scmp.lt.s32.totalorder %s21, 1
          %s199 = scalar_select %p198, %s21, 1
          %s200 = smul.addr %s199, 2
          %s201 = smul.addr %s200, 4
          %s202 = scalar_lea.vmem %s0, %s201
        $region36: #{tpu_custom_call.1} parent=31 // pred_fallthru
          _
      $region32: #{tpu_custom_call.1} parent=5 // pred_fallthru
        _
      %p203 = scmp.le.s32.totalorder 1, %s14
      %p204 = scmp.lt.s32.totalorder %s14, 5
      %p205 = pnand %p203, %p204
      %p206 = pneg %p205
      // Predicated region
      $region37: #{tpu_custom_call.1} parent=5 // pred_check
        _
      $region38: #{tpu_custom_call.1} parent=5 // pred_check_branch
        %208 = sbr.rel (%p205) target = $region40
      $region39: #{tpu_custom_call.1} parent=5 // pred_region
        %s209 = ssub.s32 %s14, 1
        %p210 = scmp.lt.s32.totalorder %s23, 1
        %s211 = scalar_select %p210, %s23, 1
        %s212 = smul.addr %s211, 2
        %s213 = smul.addr %s212, 4
        %s214 = scalar_lea.vmem %s0, %s213
        %p215 = pneg %p52
        %p216 = pneg %p49
        %p217 = pneg %p73
        %p218 = pneg %p70
        %p219 = pneg %p94
        %p220 = pneg %p91
        %p221 = pneg %p115
        %p222 = pneg %p112
        %p223 = pneg %p136
        %p224 = pneg %p133
        %p225 = pneg %p164
        %p226 = pneg %p161
        %s227 = sand.u32 %s151, 1
        %s228 = scalar_lea.sflag [#allocation6], %s227
        %s229 = sand.u32 %s151, 1
        %s230 = smul.addr %s229, 8
        %s231 = scalar_lea.vmem [#allocation5], %s230
        %p232 = scmp.lt.s32.totalorder %s23, 1
        %s233 = scalar_select %p232, %s23, 1
        %s234 = smul.addr %s233, 2
        %s235 = smul.addr %s234, 4
        %s236 = scalar_lea.vmem %s0, %s235
        %p238 = scmp.eq.s32.totalorder %s24, 0
        // Predicated region
        $region41: #{tpu_custom_call.1} parent=39 // pred_check
          %p239 = pneg %p238
        $region42: #{tpu_custom_call.1} parent=39 // pred_check_branch
          %241 = sbr.rel (%p239) target = $region44
        $region43: #{tpu_custom_call.1} parent=39 // pred_region
          %v242 = vld [vmem:[%s236] sm:$0xff]
          %v244 = vcombine.high %v242, %v242
          %vm246 = vcmask 1043456
          %v247 = vsel %vm246, %v242, 0.0
          %v248 = vsel %vm246, %v244, 0.0
          %v249 = vadd.f32 %v247, %v248
          %250 = vadd.xlane.f32.xlu0 %v249
          %v251 = vpop.xlane.xlu0 %250
          %v252 = vmul.f32 %v251, 0.00390625
          %v253 = vmul.f32 %v242, %v242
          %v255 = vcombine.high %v253, %v253
          %v257 = vsel %vm246, %v253, 0.0
          %v258 = vsel %vm246, %v255, 0.0
          %v259 = vadd.f32 %v257, %v258
          %260 = vadd.xlane.f32.xlu0 %v259
          %v261 = vpop.xlane.xlu0 %260
          %v262 = vmul.f32 %v261, 0.00390625
          %v263 = vmul.f32 %v252, %v252
          %v264 = vsub.f32 %v262, %v263
          %v265 = vmax.f32 %v264, 0.0
          %v268 = vunpack.c.l.s4 839922192
          %v269 = vunpack.c.0.s8 %v268
          %v270 = vlaneseq
          %v271 = vshrl.u32 %v270, 7
          %v272 = vsub.s32 %v269, %v271
          %v273 = vrot.slane %v252, %v272
          %v275 = vsub.f32 %v242, %v273
          %v276 = vadd.f32 %v265, 1e-05
          %v277 = vrsqrt.pop %v276
          %v280 = vunpack.c.l.s4 839922192
          %v281 = vunpack.c.0.s8 %v280
          %v282 = vlaneseq
          %v283 = vshrl.u32 %v282, 7
          %v284 = vsub.s32 %v281, %v283
          %v285 = vrot.slane %v277, %v284
          %v287 = vmul.f32 %v275, %v285
          %v289 = vcombine.high %v287, %v287
          %v291 = vpack.c.bf16 %v287, %v287
          %v292 = vpack.c.bf16 %v289, %v289
          %v293 = vld [vmem:[%s1] sm:$0xf]
          %v294 = vld [vmem:[%s1 + $0x4] sm:$0xf]
          %v295 = vld [vmem:[%s1 + $0x8] sm:$0xf]
          %v296 = vld [vmem:[%s2] sm:$0xff]
          %v297 = vld [vmem:[%s2 + $0x8] sm:$0xff]
          %v298 = vld [vmem:[%s2 + $0x10] sm:$0xff]
          %300 = vset.pattern.permute.xlu0 0
          %301 = vperm.xlu0 %300, %v296
          %v302 = vpop.permute.xlu0 %301
          %305 = vset.pattern.permute.xlu0 0
          %306 = vperm.xlu0 %305, %v297
          %v307 = vpop.permute.xlu0 %306
          %310 = vset.pattern.permute.xlu0 0
          %311 = vperm.xlu0 %310, %v298
          %v312 = vpop.permute.xlu0 %311
          %v317 = vunpack.c.l.b16 %v293
          %v318 = vunpack.c.l.b16 %v294
          %v319 = vunpack.c.l.b16 %v295
          %v320 = vpack.c.b16 %v318, %v317
          %v321 = vpack.c.b16 %v319, %v319
          %vm322 = vcmask 31744
          %v324 = vsel %vm322, %v320, 0
          %v327 = vsel %vm322, %v321, 0
          %vm329 = vcmask 1041408
          %v331 = vsel %vm329, %v291, 0
          %v334 = vsel %vm329, %v292, 0
          %336 = vmatprep.subr.bf16.mxu0 %v334
          %337 = vmatpush1.bf16.msra.mxu0 %v331
          %338 = vmatprep.subr.bf16.mxu0 0
          %339 = vmatpush1.bf16.msra.mxu0 0
          %340 = vmatprep.subr.bf16.mxu0 0
          %341 = vmatpush1.bf16.msra.mxu0 0
          %342 = vmatprep.subr.bf16.mxu0 0
          %343 = vmatpush1.bf16.msra.mxu0 0
          %344 = vmatprep.subr.bf16.mxu0 0
          %345 = vmatpush1.bf16.msra.mxu0 0
          %346 = vmatprep.subr.bf16.mxu0 0
          %347 = vmatpush1.bf16.msra.mxu0 0
          %348 = vmatprep.subr.bf16.mxu0 0
          %349 = vmatpush1.bf16.msra.mxu0 0
          %350 = vmatprep.subr.bf16.mxu0 0
          %351 = vmatpush1.bf16.msra.mxu0 0
          %352 = vmatprep.subr.bf16.mxu0 0
          %353 = vmatpush1.bf16.msra.mxu0 0
          %354 = vmatprep.subr.bf16.mxu0 0
          %355 = vmatpush1.bf16.msra.mxu0 0
          %356 = vmatprep.subr.bf16.mxu0 0
          %357 = vmatpush1.bf16.msra.mxu0 0
          %358 = vmatprep.subr.bf16.mxu0 0
          %359 = vmatpush1.bf16.msra.mxu0 0
          %360 = vmatprep.subr.bf16.mxu0 0
          %361 = vmatpush1.bf16.msra.mxu0 0
          %362 = vmatprep.subr.bf16.mxu0 0
          %363 = vmatpush1.bf16.msra.mxu0 0
          %364 = vmatprep.subr.bf16.mxu0 0
          %365 = vmatpush1.bf16.msra.mxu0 0
          %366 = vmatprep.subr.bf16.mxu0 0
          %367 = vmatpush1.bf16.msra.mxu0 0
          %368 = vmatprep.mubr.bf16.mxu0 0
          %369 = vmatmul.mubr.bf16.gmra.mrb[0].mxu0 %v324
          %v370 = vpop.f32.mrb[0].mxu0
          %v371 = vadd.f32 %v302, %v370
          %v372 = vpop.f32.mrb[0].mxu0
          %v373 = vadd.f32 %v302, %v372
          %v374 = vpop.f32.mrb[0].mxu0
          %v375 = vadd.f32 %v307, %v374
          %v376 = vpop.f32.mrb[0].mxu0
          %v377 = vadd.f32 %v307, %v376
          %378 = vmatprep.mubr.bf16.mxu0 0
          %379 = vmatmul.mubr.bf16.gmra.mrb[0].mxu0 %v327
          %v380 = vpop.f32.mrb[0].mxu0
          %v381 = vadd.f32 %v312, %v380
          %v382 = vpop.f32.mrb[0].mxu0
          %v383 = vadd.f32 %v312, %v382
          %v384 = vpop.f32.mrb[0].mxu0
          %v385 = vpop.f32.mrb[0].mxu0
          %386 = vdwg.mxu0
          %v387 = vpack.c.bf16 %v375, %v375
          %v388 = vpack.c.bf16 %v377, %v377
          %v391 = vunpack.c.l.b16 %v387
          %v392 = vunpack.c.l.b16 %v388
          %v393 = vpack.c.b16 %v392, %v391
          %395 = vst [vmem:[#allocation3] sm:$0xff] %v393
          %396 = vxpose.xlu0.b32.start [1/16] %v371, 128
          %397 = vxpose.xlu0.b32.cont [2/16] 0.0, 128
          %398 = vxpose.xlu0.b32.cont [3/16] 0.0, 128
          %399 = vxpose.xlu0.b32.cont [4/16] 0.0, 128
          %400 = vxpose.xlu0.b32.cont [5/16] 0.0, 128
          %401 = vxpose.xlu0.b32.cont [6/16] 0.0, 128
          %402 = vxpose.xlu0.b32.cont [7/16] 0.0, 128
          %403 = vxpose.xlu0.b32.cont [8/16] 0.0, 128
          %404 = vxpose.xlu0.b32.cont [9/16] 0.0, 128
          %405 = vxpose.xlu0.b32.cont [10/16] 0.0, 128
          %406 = vxpose.xlu0.b32.cont [11/16] 0.0, 128
          %407 = vxpose.xlu0.b32.cont [12/16] 0.0, 128
          %408 = vxpose.xlu0.b32.cont [13/16] 0.0, 128
          %409 = vxpose.xlu0.b32.cont [14/16] 0.0, 128
          %410 = vxpose.xlu0.b32.cont [15/16] 0.0, 128
          %411 = vxpose.xlu0.b32.end [16/16] 0.0, 128
          %v412 = vpop.trf.xlu0
          %v413 = vpop.trf.xlu0
          %v414 = vpop.trf.xlu0
          %v415 = vpop.trf.xlu0
          %v416 = vpop.trf.xlu0
          %v417 = vpop.trf.xlu0
          %v418 = vpop.trf.xlu0
          %v419 = vpop.trf.xlu0
          %v420 = vpop.trf.xlu0
          %v421 = vpop.trf.xlu0
          %v422 = vpop.trf.xlu0
          %v423 = vpop.trf.xlu0
          %v424 = vpop.trf.xlu0
          %v425 = vpop.trf.xlu0
          %v426 = vpop.trf.xlu0
          %v427 = vpop.trf.xlu0
          %428 = vxpose.xlu0.b32.start [1/16] %v373, 128
          %429 = vxpose.xlu0.b32.cont [2/16] 0.0, 128
          %430 = vxpose.xlu0.b32.cont [3/16] 0.0, 128
          %431 = vxpose.xlu0.b32.cont [4/16] 0.0, 128
          %432 = vxpose.xlu0.b32.cont [5/16] 0.0, 128
          %433 = vxpose.xlu0.b32.cont [6/16] 0.0, 128
          %434 = vxpose.xlu0.b32.cont [7/16] 0.0, 128
          %435 = vxpose.xlu0.b32.cont [8/16] 0.0, 128
          %436 = vxpose.xlu0.b32.cont [9/16] 0.0, 128
          %437 = vxpose.xlu0.b32.cont [10/16] 0.0, 128
          %438 = vxpose.xlu0.b32.cont [11/16] 0.0, 128
          %439 = vxpose.xlu0.b32.cont [12/16] 0.0, 128
          %440 = vxpose.xlu0.b32.cont [13/16] 0.0, 128
          %441 = vxpose.xlu0.b32.cont [14/16] 0.0, 128
          %442 = vxpose.xlu0.b32.cont [15/16] 0.0, 128
          %443 = vxpose.xlu0.b32.end [16/16] 0.0, 128
          %v444 = vpop.trf.xlu0
          %v445 = vpop.trf.xlu0
          %v446 = vpop.trf.xlu0
          %v447 = vpop.trf.xlu0
          %v448 = vpop.trf.xlu0
          %v449 = vpop.trf.xlu0
          %v450 = vpop.trf.xlu0
          %v451 = vpop.trf.xlu0
          %v452 = vpop.trf.xlu0
          %v453 = vpop.trf.xlu0
          %v454 = vpop.trf.xlu0
          %v455 = vpop.trf.xlu0
          %v456 = vpop.trf.xlu0
          %v457 = vpop.trf.xlu0
          %v458 = vpop.trf.xlu0
          %v459 = vpop.trf.xlu0
          %v460 = vpack.c.bf16 %v413, %v412
          %v461 = vpack.c.bf16 %v415, %v414
          %v462 = vpack.c.bf16 %v417, %v416
          %v463 = vpack.c.bf16 %v419, %v418
          %v464 = vpack.c.bf16 %v421, %v420
          %v465 = vpack.c.bf16 %v423, %v422
          %v466 = vpack.c.bf16 %v425, %v424
          %v467 = vpack.c.bf16 %v427, %v426
          %v468 = vpack.c.bf16 %v445, %v444
          %v469 = vpack.c.bf16 %v447, %v446
          %v470 = vpack.c.bf16 %v449, %v448
          %v471 = vpack.c.bf16 %v451, %v450
          %v472 = vpack.c.bf16 %v453, %v452
          %v473 = vpack.c.bf16 %v455, %v454
          %v474 = vpack.c.bf16 %v457, %v456
          %v475 = vpack.c.bf16 %v459, %v458
          %vm476 = vcmask 64512
          %477 = vst.msk [vmem:[#allocation2] sm:$0xff] %vm476, %v460
          %478 = vst.msk [vmem:[#allocation2 + $0x8] sm:$0xff] %vm476, %v461
          %479 = vst.msk [vmem:[#allocation2 + $0x10] sm:$0xff] %vm476, %v462
          %480 = vst.msk [vmem:[#allocation2 + $0x18] sm:$0xff] %vm476, %v463
          %481 = vst.msk [vmem:[#allocation2 + $0x20] sm:$0xff] %vm476, %v464
          %482 = vst.msk [vmem:[#allocation2 + $0x28] sm:$0xff] %vm476, %v465
          %483 = vst.msk [vmem:[#allocation2 + $0x30] sm:$0xff] %vm476, %v466
          %484 = vst.msk [vmem:[#allocation2 + $0x38] sm:$0xff] %vm476, %v467
          %485 = vst.msk [vmem:[#allocation2 + $0x40] sm:$0xff] %vm476, %v468
          %486 = vst.msk [vmem:[#allocation2 + $0x48] sm:$0xff] %vm476, %v469
          %487 = vst.msk [vmem:[#allocation2 + $0x50] sm:$0xff] %vm476, %v470
          %488 = vst.msk [vmem:[#allocation2 + $0x58] sm:$0xff] %vm476, %v471
          %489 = vst.msk [vmem:[#allocation2 + $0x60] sm:$0xff] %vm476, %v472
          %490 = vst.msk [vmem:[#allocation2 + $0x68] sm:$0xff] %vm476, %v473
          %491 = vst.msk [vmem:[#allocation2 + $0x70] sm:$0xff] %vm476, %v474
          %492 = vst.msk [vmem:[#allocation2 + $0x78] sm:$0xff] %vm476, %v475
          %493 = vxpose.xlu0.b32.start [1/16] %v381, 128
          %494 = vxpose.xlu0.b32.cont [2/16] 0.0, 128
          %495 = vxpose.xlu0.b32.cont [3/16] 0.0, 128
          %496 = vxpose.xlu0.b32.cont [4/16] 0.0, 128
          %497 = vxpose.xlu0.b32.cont [5/16] 0.0, 128
          %498 = vxpose.xlu0.b32.cont [6/16] 0.0, 128
          %499 = vxpose.xlu0.b32.cont [7/16] 0.0, 128
          %500 = vxpose.xlu0.b32.cont [8/16] 0.0, 128
          %501 = vxpose.xlu0.b32.cont [9/16] 0.0, 128
          %502 = vxpose.xlu0.b32.cont [10/16] 0.0, 128
          %503 = vxpose.xlu0.b32.cont [11/16] 0.0, 128
          %504 = vxpose.xlu0.b32.cont [12/16] 0.0, 128
          %505 = vxpose.xlu0.b32.cont [13/16] 0.0, 128
          %506 = vxpose.xlu0.b32.cont [14/16] 0.0, 128
          %507 = vxpose.xlu0.b32.cont [15/16] 0.0, 128
          %508 = vxpose.xlu0.b32.end [16/16] 0.0, 128
          %v509 = vpop.trf.xlu0
          %v510 = vpop.trf.xlu0
          %v511 = vpop.trf.xlu0
          %v512 = vpop.trf.xlu0
          %v513 = vpop.trf.xlu0
          %v514 = vpop.trf.xlu0
          %v515 = vpop.trf.xlu0
          %v516 = vpop.trf.xlu0
          %v517 = vpop.trf.xlu0
          %v518 = vpop.trf.xlu0
          %v519 = vpop.trf.xlu0
          %v520 = vpop.trf.xlu0
          %v521 = vpop.trf.xlu0
          %v522 = vpop.trf.xlu0
          %v523 = vpop.trf.xlu0
          %v524 = vpop.trf.xlu0
          %525 = vxpose.xlu0.b32.start [1/16] %v383, 128
          %526 = vxpose.xlu0.b32.cont [2/16] 0.0, 128
          %527 = vxpose.xlu0.b32.cont [3/16] 0.0, 128
          %528 = vxpose.xlu0.b32.cont [4/16] 0.0, 128
          %529 = vxpose.xlu0.b32.cont [5/16] 0.0, 128
          %530 = vxpose.xlu0.b32.cont [6/16] 0.0, 128
          %531 = vxpose.xlu0.b32.cont [7/16] 0.0, 128
          %532 = vxpose.xlu0.b32.cont [8/16] 0.0, 128
          %533 = vxpose.xlu0.b32.cont [9/16] 0.0, 128
          %534 = vxpose.xlu0.b32.cont [10/16] 0.0, 128
          %535 = vxpose.xlu0.b32.cont [11/16] 0.0, 128
          %536 = vxpose.xlu0.b32.cont [12/16] 0.0, 128
          %537 = vxpose.xlu0.b32.cont [13/16] 0.0, 128
          %538 = vxpose.xlu0.b32.cont [14/16] 0.0, 128
          %539 = vxpose.xlu0.b32.cont [15/16] 0.0, 128
          %540 = vxpose.xlu0.b32.end [16/16] 0.0, 128
          %v541 = vpop.trf.xlu0
          %v542 = vpop.trf.xlu0
          %v543 = vpop.trf.xlu0
          %v544 = vpop.trf.xlu0
          %v545 = vpop.trf.xlu0
          %v546 = vpop.trf.xlu0
          %v547 = vpop.trf.xlu0
          %v548 = vpop.trf.xlu0
          %v549 = vpop.trf.xlu0
          %v550 = vpop.trf.xlu0
          %v551 = vpop.trf.xlu0
          %v552 = vpop.trf.xlu0
          %v553 = vpop.trf.xlu0
          %v554 = vpop.trf.xlu0
          %v555 = vpop.trf.xlu0
          %v556 = vpop.trf.xlu0
          %v557 = vpack.c.bf16 %v510, %v509
          %v558 = vpack.c.bf16 %v512, %v511
          %v559 = vpack.c.bf16 %v514, %v513
          %v560 = vpack.c.bf16 %v516, %v515
          %v561 = vpack.c.bf16 %v518, %v517
          %v562 = vpack.c.bf16 %v520, %v519
          %v563 = vpack.c.bf16 %v522, %v521
          %v564 = vpack.c.bf16 %v524, %v523
          %v565 = vpack.c.bf16 %v542, %v541
          %v566 = vpack.c.bf16 %v544, %v543
          %v567 = vpack.c.bf16 %v546, %v545
          %v568 = vpack.c.bf16 %v548, %v547
          %v569 = vpack.c.bf16 %v550, %v549
          %v570 = vpack.c.bf16 %v552, %v551
          %v571 = vpack.c.bf16 %v554, %v553
          %v572 = vpack.c.bf16 %v556, %v555
          %573 = vst.msk [vmem:[#allocation4] sm:$0xff] %vm476, %v557
          %574 = vst.msk [vmem:[#allocation4 + $0x8] sm:$0xff] %vm476, %v558
          %575 = vst.msk [vmem:[#allocation4 + $0x10] sm:$0xff] %vm476, %v559
          %576 = vst.msk [vmem:[#allocation4 + $0x18] sm:$0xff] %vm476, %v560
          %577 = vst.msk [vmem:[#allocation4 + $0x20] sm:$0xff] %vm476, %v561
          %578 = vst.msk [vmem:[#allocation4 + $0x28] sm:$0xff] %vm476, %v562
          %579 = vst.msk [vmem:[#allocation4 + $0x30] sm:$0xff] %vm476, %v563
          %580 = vst.msk [vmem:[#allocation4 + $0x38] sm:$0xff] %vm476, %v564
          %581 = vst.msk [vmem:[#allocation4 + $0x40] sm:$0xff] %vm476, %v565
          %582 = vst.msk [vmem:[#allocation4 + $0x48] sm:$0xff] %vm476, %v566
          %583 = vst.msk [vmem:[#allocation4 + $0x50] sm:$0xff] %vm476, %v567
          %584 = vst.msk [vmem:[#allocation4 + $0x58] sm:$0xff] %vm476, %v568
          %585 = vst.msk [vmem:[#allocation4 + $0x60] sm:$0xff] %vm476, %v569
          %586 = vst.msk [vmem:[#allocation4 + $0x68] sm:$0xff] %vm476, %v570
          %587 = vst.msk [vmem:[#allocation4 + $0x70] sm:$0xff] %vm476, %v571
          %588 = vst.msk [vmem:[#allocation4 + $0x78] sm:$0xff] %vm476, %v572
        $region44: #{tpu_custom_call.1} parent=39 // pred_fallthru
          _
        %s589 = smul.u32 %s24, 128
        %s590 = sshra.s32 %s589, 4
        %s591 = sand.u32 %s589, 15
        %s592 = smul.addr %s590, 8
        %s593 = scalar_lea.vmem [#allocation2], %s592
        %v594 = vld [vmem:[%s593] sm:$0xff]
        %v595 = vld [vmem:[%s593 + $0x8] sm:$0xff]
        %v596 = vld [vmem:[%s593 + $0x10] sm:$0xff]
        %v597 = vld [vmem:[%s593 + $0x18] sm:$0xff]
        %v598 = vld [vmem:[%s593 + $0x20] sm:$0xff]
        %v599 = vld [vmem:[%s593 + $0x28] sm:$0xff]
        %v600 = vld [vmem:[%s593 + $0x30] sm:$0xff]
        %v601 = vld [vmem:[%s593 + $0x38] sm:$0xff]
        %v602 = vld [vmem:[#allocation3] sm:$0xf]
        %v603 = vld [vmem:[#allocation4] sm:$0xff]
        %v604 = vld [vmem:[#allocation4 + $0x8] sm:$0xff]
        %v605 = vld [vmem:[#allocation4 + $0x10] sm:$0xff]
        %v606 = vld [vmem:[#allocation4 + $0x18] sm:$0xff]
        %v607 = vld [vmem:[#allocation4 + $0x20] sm:$0xff]
        %v608 = vld [vmem:[#allocation4 + $0x28] sm:$0xff]
        %v609 = vld [vmem:[#allocation4 + $0x30] sm:$0xff]
        %v610 = vld [vmem:[#allocation4 + $0x38] sm:$0xff]
        %vm611 = vcmask 64512
        %v613 = vsel %vm611, %v594, 0
        %v616 = vsel %vm611, %v595, 0
        %v619 = vsel %vm611, %v596, 0
        %v622 = vsel %vm611, %v597, 0
        %v625 = vsel %vm611, %v598, 0
        %v628 = vsel %vm611, %v599, 0
        %v631 = vsel %vm611, %v600, 0
        %v634 = vsel %vm611, %v601, 0
        %vm636 = vcmask 1043456
        %v638 = vsel %vm636, %v602, 0
        %640 = vmatprep.subr.bf16.mxu0 0
        %641 = vmatpush1.bf16.msra.mxu0 %v638
        %642 = vmatprep.subr.bf16.mxu0 0
        %643 = vmatpush1.bf16.msra.mxu0 0
        %644 = vmatprep.subr.bf16.mxu0 0
        %645 = vmatpush1.bf16.msra.mxu0 0
        %646 = vmatprep.subr.bf16.mxu0 0
        %647 = vmatpush1.bf16.msra.mxu0 0
        %648 = vmatprep.subr.bf16.mxu0 0
        %649 = vmatpush1.bf16.msra.mxu0 0
        %650 = vmatprep.subr.bf16.mxu0 0
        %651 = vmatpush1.bf16.msra.mxu0 0
        %652 = vmatprep.subr.bf16.mxu0 0
        %653 = vmatpush1.bf16.msra.mxu0 0
        %654 = vmatprep.subr.bf16.mxu0 0
        %655 = vmatpush1.bf16.msra.mxu0 0
        %656 = vmatprep.subr.bf16.mxu0 0
        %657 = vmatpush1.bf16.msra.mxu0 0
        %658 = vmatprep.subr.bf16.mxu0 0
        %659 = vmatpush1.bf16.msra.mxu0 0
        %660 = vmatprep.subr.bf16.mxu0 0
        %661 = vmatpush1.bf16.msra.mxu0 0
        %662 = vmatprep.subr.bf16.mxu0 0
        %663 = vmatpush1.bf16.msra.mxu0 0
        %664 = vmatprep.subr.bf16.mxu0 0
        %665 = vmatpush1.bf16.msra.mxu0 0
        %666 = vmatprep.subr.bf16.mxu0 0
        %667 = vmatpush1.bf16.msra.mxu0 0
        %668 = vmatprep.subr.bf16.mxu0 0
        %669 = vmatpush1.bf16.msra.mxu0 0
        %670 = vmatprep.subr.bf16.mxu0 0
        %671 = vmatpush1.bf16.msra.mxu0 0
        %672 = vmatprep.mubr.bf16.mxu0 0
        %673 = vmatmul.mubr.bf16.gmra.mrb[0].mxu0 %v613
        %v674 = vpop.f32.mrb[0].mxu0
        %v675 = vadd.f32 0.0, %v674
        %v676 = vpop.f32.mrb[0].mxu0
        %v677 = vpop.f32.mrb[0].mxu0
        %v678 = vadd.f32 0.0, %v677
        %v679 = vpop.f32.mrb[0].mxu0
        %680 = vmatprep.mubr.bf16.mxu0 0
        %681 = vmatmul.mubr.bf16.gmra.mrb[0].mxu0 %v616
        %v682 = vpop.f32.mrb[0].mxu0
        %v683 = vadd.f32 0.0, %v682
        %v684 = vpop.f32.mrb[0].mxu0
        %v685 = vpop.f32.mrb[0].mxu0
        %v686 = vadd.f32 0.0, %v685
        %v687 = vpop.f32.mrb[0].mxu0
        %688 = vmatprep.mubr.bf16.mxu0 0
        %689 = vmatmul.mubr.bf16.gmra.mrb[0].mxu0 %v619
        %v690 = vpop.f32.mrb[0].mxu0
        %v691 = vadd.f32 0.0, %v690
        %v692 = vpop.f32.mrb[0].mxu0
        %v693 = vpop.f32.mrb[0].mxu0
        %v694 = vadd.f32 0.0, %v693
        %v695 = vpop.f32.mrb[0].mxu0
        %696 = vmatprep.mubr.bf16.mxu0 0
        %697 = vmatmul.mubr.bf16.gmra.mrb[0].mxu0 %v622
        %v698 = vpop.f32.mrb[0].mxu0
        %v699 = vadd.f32 0.0, %v698
        %v700 = vpop.f32.mrb[0].mxu0
        %v701 = vpop.f32.mrb[0].mxu0
        %v702 = vadd.f32 0.0, %v701
        %v703 = vpop.f32.mrb[0].mxu0
        %704 = vmatprep.mubr.bf16.mxu0 0
        %705 = vmatmul.mubr.bf16.gmra.mrb[0].mxu0 %v625
        %v706 = vpop.f32.mrb[0].mxu0
        %v707 = vadd.f32 0.0, %v706
        %v708 = vpop.f32.mrb[0].mxu0
        %v709 = vpop.f32.mrb[0].mxu0
        %v710 = vadd.f32 0.0, %v709
        %v711 = vpop.f32.mrb[0].mxu0
        %712 = vmatprep.mubr.bf16.mxu0 0
        %713 = vmatmul.mubr.bf16.gmra.mrb[0].mxu0 %v628
        %v714 = vpop.f32.mrb[0].mxu0
        %v715 = vadd.f32 0.0, %v714
        %v716 = vpop.f32.mrb[0].mxu0
        %v717 = vpop.f32.mrb[0].mxu0
        %v718 = vadd.f32 0.0, %v717
        %v719 = vpop.f32.mrb[0].mxu0
        %720 = vmatprep.mubr.bf16.mxu0 0
        %721 = vmatmul.mubr.bf16.gmra.mrb[0].mxu0 %v631
        %v722 = vpop.f32.mrb[0].mxu0
        %v723 = vadd.f32 0.0, %v722
        %v724 = vpop.f32.mrb[0].mxu0
        %v725 = vpop.f32.mrb[0].mxu0
        %v726 = vadd.f32 0.0, %v725
        %v727 = vpop.f32.mrb[0].mxu0
        %728 = vmatprep.mubr.bf16.mxu0 0
        %729 = vmatmul.mubr.bf16.gmra.mrb[0].mxu0 %v634
        %v730 = vpop.f32.mrb[0].mxu0
        %v731 = vadd.f32 0.0, %v730
        %v732 = vpop.f32.mrb[0].mxu0
        %v733 = vpop.f32.mrb[0].mxu0
        %v734 = vadd.f32 0.0, %v733
        %v735 = vpop.f32.mrb[0].mxu0
        %736 = vdwg.mxu0
        %737 = vmax.xlane.f32.xlu0 %v675
        %v738 = vpop.xlane.xlu0 %737
        %739 = vmax.xlane.f32.xlu0 %v678
        %v740 = vpop.xlane.xlu0 %739
        %741 = vmax.xlane.f32.xlu0 %v683
        %v742 = vpop.xlane.xlu0 %741
        %743 = vmax.xlane.f32.xlu0 %v686
        %v744 = vpop.xlane.xlu0 %743
        %745 = vmax.xlane.f32.xlu0 %v691
        %v746 = vpop.xlane.xlu0 %745
        %747 = vmax.xlane.f32.xlu0 %v694
        %v748 = vpop.xlane.xlu0 %747
        %749 = vmax.xlane.f32.xlu0 %v699
        %v750 = vpop.xlane.xlu0 %749
        %751 = vmax.xlane.f32.xlu0 %v702
        %v752 = vpop.xlane.xlu0 %751
        %753 = vmax.xlane.f32.xlu0 %v707
        %v754 = vpop.xlane.xlu0 %753
        %755 = vmax.xlane.f32.xlu0 %v710
        %v756 = vpop.xlane.xlu0 %755
        %757 = vmax.xlane.f32.xlu0 %v715
        %v758 = vpop.xlane.xlu0 %757
        %759 = vmax.xlane.f32.xlu0 %v718
        %v760 = vpop.xlane.xlu0 %759
        %761 = vmax.xlane.f32.xlu0 %v723
        %v762 = vpop.xlane.xlu0 %761
        %763 = vmax.xlane.f32.xlu0 %v726
        %v764 = vpop.xlane.xlu0 %763
        %765 = vmax.xlane.f32.xlu0 %v731
        %v766 = vpop.xlane.xlu0 %765
        %767 = vmax.xlane.f32.xlu0 %v734
        %v768 = vpop.xlane.xlu0 %767
        %v769 = vsub.f32 -inf, %v738
        %v770 = vsub.f32 -inf, %v740
        %v771 = vsub.f32 -inf, %v742
        %v772 = vsub.f32 -inf, %v744
        %v773 = vsub.f32 -inf, %v746
        %v774 = vsub.f32 -inf, %v748
        %v775 = vsub.f32 -inf, %v750
        %v776 = vsub.f32 -inf, %v752
        %v777 = vsub.f32 -inf, %v754
        %v778 = vsub.f32 -inf, %v756
        %v779 = vsub.f32 -inf, %v758
        %v780 = vsub.f32 -inf, %v760
        %v781 = vsub.f32 -inf, %v762
        %v782 = vsub.f32 -inf, %v764
        %v783 = vsub.f32 -inf, %v766
        %v784 = vsub.f32 -inf, %v768
        %v785 = vmul.f32 %v769, 1.442695
        %v786 = vpow.pop %v785
        %v787 = vmul.f32 %v770, 1.442695
        %v788 = vpow.pop %v787
        %v789 = vmul.f32 %v771, 1.442695
        %v790 = vpow.pop %v789
        %v791 = vmul.f32 %v772, 1.442695
        %v792 = vpow.pop %v791
        %v793 = vmul.f32 %v773, 1.442695
        %v794 = vpow.pop %v793
        %v795 = vmul.f32 %v774, 1.442695
        %v796 = vpow.pop %v795
        %v797 = vmul.f32 %v775, 1.442695
        %v798 = vpow.pop %v797
        %v799 = vmul.f32 %v776, 1.442695
        %v800 = vpow.pop %v799
        %v801 = vmul.f32 %v777, 1.442695
        %v802 = vpow.pop %v801
        %v803 = vmul.f32 %v778, 1.442695
        %v804 = vpow.pop %v803
        %v805 = vmul.f32 %v779, 1.442695
        %v806 = vpow.pop %v805
        %v807 = vmul.f32 %v780, 1.442695
        %v808 = vpow.pop %v807
        %v809 = vmul.f32 %v781, 1.442695
        %v810 = vpow.pop %v809
        %v811 = vmul.f32 %v782, 1.442695
        %v812 = vpow.pop %v811
        %v813 = vmul.f32 %v783, 1.442695
        %v814 = vpow.pop %v813
        %v815 = vmul.f32 %v784, 1.442695
        %v816 = vpow.pop %v815
        %v817 = vsub.f32 %v675, %v738
        %v818 = vsub.f32 %v678, %v740
        %v819 = vsub.f32 %v683, %v742
        %v820 = vsub.f32 %v686, %v744
        %v821 = vsub.f32 %v691, %v746
        %v822 = vsub.f32 %v694, %v748
        %v823 = vsub.f32 %v699, %v750
        %v824 = vsub.f32 %v702, %v752
        %v825 = vsub.f32 %v707, %v754
        %v826 = vsub.f32 %v710, %v756
        %v827 = vsub.f32 %v715, %v758
        %v828 = vsub.f32 %v718, %v760
        %v829 = vsub.f32 %v723, %v762
        %v830 = vsub.f32 %v726, %v764
        %v831 = vsub.f32 %v731, %v766
        %v832 = vsub.f32 %v734, %v768
        %v833 = vmul.f32 %v817, 1.442695
        %v834 = vpow.pop %v833
        %v835 = vmul.f32 %v818, 1.442695
        %v836 = vpow.pop %v835
        %v837 = vmul.f32 %v819, 1.442695
        %v838 = vpow.pop %v837
        %v839 = vmul.f32 %v820, 1.442695
        %v840 = vpow.pop %v839
        %v841 = vmul.f32 %v821, 1.442695
        %v842 = vpow.pop %v841
        %v843 = vmul.f32 %v822, 1.442695
        %v844 = vpow.pop %v843
        %v845 = vmul.f32 %v823, 1.442695
        %v846 = vpow.pop %v845
        %v847 = vmul.f32 %v824, 1.442695
        %v848 = vpow.pop %v847
        %v849 = vmul.f32 %v825, 1.442695
        %v850 = vpow.pop %v849
        %v851 = vmul.f32 %v826, 1.442695
        %v852 = vpow.pop %v851
        %v853 = vmul.f32 %v827, 1.442695
        %v854 = vpow.pop %v853
        %v855 = vmul.f32 %v828, 1.442695
        %v856 = vpow.pop %v855
        %v857 = vmul.f32 %v829, 1.442695
        %v858 = vpow.pop %v857
        %v859 = vmul.f32 %v830, 1.442695
        %v860 = vpow.pop %v859
        %v861 = vmul.f32 %v831, 1.442695
        %v862 = vpow.pop %v861
        %v863 = vmul.f32 %v832, 1.442695
        %v864 = vpow.pop %v863
        %v865 = vmul.f32 %v786, 0.0
        %v866 = vmul.f32 %v788, 0.0
        %v867 = vmul.f32 %v790, 0.0
        %v868 = vmul.f32 %v792, 0.0
        %v869 = vmul.f32 %v794, 0.0
        %v870 = vmul.f32 %v796, 0.0
        %v871 = vmul.f32 %v798, 0.0
        %v872 = vmul.f32 %v800, 0.0
        %v873 = vmul.f32 %v802, 0.0
        %v874 = vmul.f32 %v804, 0.0
        %v875 = vmul.f32 %v806, 0.0
        %v876 = vmul.f32 %v808, 0.0
        %v877 = vmul.f32 %v810, 0.0
        %v878 = vmul.f32 %v812, 0.0
        %v879 = vmul.f32 %v814, 0.0
        %v880 = vmul.f32 %v816, 0.0
        %881 = vadd.xlane.f32.xlu0 %v834
        %v882 = vpop.xlane.xlu0 %881
        %883 = vadd.xlane.f32.xlu0 %v836
        %v884 = vpop.xlane.xlu0 %883
        %885 = vadd.xlane.f32.xlu0 %v838
        %v886 = vpop.xlane.xlu0 %885
        %887 = vadd.xlane.f32.xlu0 %v840
        %v888 = vpop.xlane.xlu0 %887
        %889 = vadd.xlane.f32.xlu0 %v842
        %v890 = vpop.xlane.xlu0 %889
        %891 = vadd.xlane.f32.xlu0 %v844
        %v892 = vpop.xlane.xlu0 %891
        %893 = vadd.xlane.f32.xlu0 %v846
        %v894 = vpop.xlane.xlu0 %893
        %895 = vadd.xlane.f32.xlu0 %v848
        %v896 = vpop.xlane.xlu0 %895
        %897 = vadd.xlane.f32.xlu0 %v850
        %v898 = vpop.xlane.xlu0 %897
        %899 = vadd.xlane.f32.xlu0 %v852
        %v900 = vpop.xlane.xlu0 %899
        %901 = vadd.xlane.f32.xlu0 %v854
        %v902 = vpop.xlane.xlu0 %901
        %903 = vadd.xlane.f32.xlu0 %v856
        %v904 = vpop.xlane.xlu0 %903
        %905 = vadd.xlane.f32.xlu0 %v858
        %v906 = vpop.xlane.xlu0 %905
        %907 = vadd.xlane.f32.xlu0 %v860
        %v908 = vpop.xlane.xlu0 %907
        %909 = vadd.xlane.f32.xlu0 %v862
        %v910 = vpop.xlane.xlu0 %909
        %911 = vadd.xlane.f32.xlu0 %v864
        %v912 = vpop.xlane.xlu0 %911
        %v913 = vadd.f32 %v865, %v882
        %v914 = vadd.f32 %v866, %v884
        %v915 = vadd.f32 %v867, %v886
        %v916 = vadd.f32 %v868, %v888
        %v917 = vadd.f32 %v869, %v890
        %v918 = vadd.f32 %v870, %v892
        %v919 = vadd.f32 %v871, %v894
        %v920 = vadd.f32 %v872, %v896
        %v921 = vadd.f32 %v873, %v898
        %v922 = vadd.f32 %v874, %v900
        %v923 = vadd.f32 %v875, %v902
        %v924 = vadd.f32 %v876, %v904
        %v925 = vadd.f32 %v877, %v906
        %v926 = vadd.f32 %v878, %v908
        %v927 = vadd.f32 %v879, %v910
        %v928 = vadd.f32 %v880, %v912
        %v929 = vpack.c.bf16 %v836, %v834
        %v930 = vpack.c.bf16 %v840, %v838
        %v931 = vpack.c.bf16 %v844, %v842
        %v932 = vpack.c.bf16 %v848, %v846
        %v933 = vpack.c.bf16 %v852, %v850
        %v934 = vpack.c.bf16 %v856, %v854
        %v935 = vpack.c.bf16 %v860, %v858
        %v936 = vpack.c.bf16 %v864, %v862
        %937 = vmatprep.subr.bf16.mxu0 0
        %938 = vmatpush1.bf16.msra.mxu0 %v603
        %939 = vmatprep.subr.bf16.mxu0 0
        %940 = vmatpush1.bf16.msra.mxu0 %v604
        %941 = vmatprep.subr.bf16.mxu0 0
        %942 = vmatpush1.bf16.msra.mxu0 %v605
        %943 = vmatprep.subr.bf16.mxu0 0
        %944 = vmatpush1.bf16.msra.mxu0 %v606
        %945 = vmatprep.subr.bf16.mxu0 0
        %946 = vmatpush1.bf16.msra.mxu0 %v607
        %947 = vmatprep.subr.bf16.mxu0 0
        %948 = vmatpush1.bf16.msra.mxu0 %v608
        %949 = vmatprep.subr.bf16.mxu0 0
        %950 = vmatpush1.bf16.msra.mxu0 %v609
        %951 = vmatprep.subr.bf16.mxu0 0
        %952 = vmatpush1.bf16.msra.mxu0 %v610
        %953 = vmatprep.subr.bf16.mxu0 0
        %954 = vmatpush1.bf16.msra.mxu0 0
        %955 = vmatprep.subr.bf16.mxu0 0
        %956 = vmatpush1.bf16.msra.mxu0 0
        %957 = vmatprep.subr.bf16.mxu0 0
        %958 = vmatpush1.bf16.msra.mxu0 0
        %959 = vmatprep.subr.bf16.mxu0 0
        %960 = vmatpush1.bf16.msra.mxu0 0
        %961 = vmatprep.subr.bf16.mxu0 0
        %962 = vmatpush1.bf16.msra.mxu0 0
        %963 = vmatprep.subr.bf16.mxu0 0
        %964 = vmatpush1.bf16.msra.mxu0 0
        %965 = vmatprep.subr.bf16.mxu0 0
        %966 = vmatpush1.bf16.msra.mxu0 0
        %967 = vmatprep.subr.bf16.mxu0 0
        %968 = vmatpush1.bf16.msra.mxu0 0
        %969 = vmatprep.mubr.bf16.mxu0 0
        %970 = vmatmul.mubr.bf16.gmra.mrb[0].mxu0 %v929
        %v971 = vpop.f32.mrb[0].mxu0
        %v972 = vadd.f32 0.0, %v971
        %v973 = vpop.f32.mrb[0].mxu0
        %v974 = vpop.f32.mrb[0].mxu0
        %v975 = vadd.f32 0.0, %v974
        %v976 = vpop.f32.mrb[0].mxu0
        %977 = vmatprep.mubr.bf16.mxu0 0
        %978 = vmatmul.mubr.bf16.gmra.mrb[0].mxu0 %v930
        %v979 = vpop.f32.mrb[0].mxu0
        %v980 = vadd.f32 0.0, %v979
        %v981 = vpop.f32.mrb[0].mxu0
        %v982 = vpop.f32.mrb[0].mxu0
        %v983 = vadd.f32 0.0, %v982
        %v984 = vpop.f32.mrb[0].mxu0
        %985 = vmatprep.mubr.bf16.mxu0 0
        %986 = vmatmul.mubr.bf16.gmra.mrb[0].mxu0 %v931
        %v987 = vpop.f32.mrb[0].mxu0
        %v988 = vadd.f32 0.0, %v987
        %v989 = vpop.f32.mrb[0].mxu0
        %v990 = vpop.f32.mrb[0].mxu0
        %v991 = vadd.f32 0.0, %v990
        %v992 = vpop.f32.mrb[0].mxu0
        %993 = vmatprep.mubr.bf16.mxu0 0
        %994 = vmatmul.mubr.bf16.gmra.mrb[0].mxu0 %v932
        %v995 = vpop.f32.mrb[0].mxu0
        %v996 = vadd.f32 0.0, %v995
        %v997 = vpop.f32.mrb[0].mxu0
        %v998 = vpop.f32.mrb[0].mxu0
        %v999 = vadd.f32 0.0, %v998
        %v1000 = vpop.f32.mrb[0].mxu0
        %1001 = vmatprep.mubr.bf16.mxu0 0
        %1002 = vmatmul.mubr.bf16.gmra.mrb[0].mxu0 %v933
        %v1003 = vpop.f32.mrb[0].mxu0
        %v1004 = vadd.f32 0.0, %v1003
        %v1005 = vpop.f32.mrb[0].mxu0
        %v1006 = vpop.f32.mrb[0].mxu0
        %v1007 = vadd.f32 0.0, %v1006
        %v1008 = vpop.f32.mrb[0].mxu0
        %1009 = vmatprep.mubr.bf16.mxu0 0
        %1010 = vmatmul.mubr.bf16.gmra.mrb[0].mxu0 %v934
        %v1011 = vpop.f32.mrb[0].mxu0
        %v1012 = vadd.f32 0.0, %v1011
        %v1013 = vpop.f32.mrb[0].mxu0
        %v1014 = vpop.f32.mrb[0].mxu0
        %v1015 = vadd.f32 0.0, %v1014
        %v1016 = vpop.f32.mrb[0].mxu0
        %1017 = vmatprep.mubr.bf16.mxu0 0
        %1018 = vmatmul.mubr.bf16.gmra.mrb[0].mxu0 %v935
        %v1019 = vpop.f32.mrb[0].mxu0
        %v1020 = vadd.f32 0.0, %v1019
        %v1021 = vpop.f32.mrb[0].mxu0
        %v1022 = vpop.f32.mrb[0].mxu0
        %v1023 = vadd.f32 0.0, %v1022
        %v1024 = vpop.f32.mrb[0].mxu0
        %1025 = vmatprep.mubr.bf16.mxu0 0
        %1026 = vmatmul.mubr.bf16.gmra.mrb[0].mxu0 %v936
        %v1027 = vpop.f32.mrb[0].mxu0
        %v1028 = vadd.f32 0.0, %v1027
        %v1029 = vpop.f32.mrb[0].mxu0
        %v1030 = vpop.f32.mrb[0].mxu0
        %v1031 = vadd.f32 0.0, %v1030
        %v1032 = vpop.f32.mrb[0].mxu0
        %1033 = vdwg.mxu0
        %v1034 = vadd.f32 %v865, %v972
        %v1035 = vadd.f32 %v866, %v975
        %v1036 = vadd.f32 %v867, %v980
        %v1037 = vadd.f32 %v868, %v983
        %v1038 = vadd.f32 %v869, %v988
        %v1039 = vadd.f32 %v870, %v991
        %v1040 = vadd.f32 %v871, %v996
        %v1041 = vadd.f32 %v872, %v999
        %v1042 = vadd.f32 %v873, %v1004
        %v1043 = vadd.f32 %v874, %v1007
        %v1044 = vadd.f32 %v875, %v1012
        %v1045 = vadd.f32 %v876, %v1015
        %v1046 = vadd.f32 %v877, %v1020
        %v1047 = vadd.f32 %v878, %v1023
        %v1048 = vadd.f32 %v879, %v1028
        %v1049 = vadd.f32 %v880, %v1031
        %s1050 = scalar_lea.vmem [#allocation3], 4
        %v1051 = vld [vmem:[%s1050] sm:$0xf]
        %s1052 = scalar_lea.vmem [#allocation4], 64
        %v1053 = vld [vmem:[%s1052] sm:$0xff]
        %v1054 = vld [vmem:[%s1052 + $0x8] sm:$0xff]
        %v1055 = vld [vmem:[%s1052 + $0x10] sm:$0xff]
        %v1056 = vld [vmem:[%s1052 + $0x18] sm:$0xff]
        %v1057 = vld [vmem:[%s1052 + $0x20] sm:$0xff]
        %v1058 = vld [vmem:[%s1052 + $0x28] sm:$0xff]
        %v1059 = vld [vmem:[%s1052 + $0x30] sm:$0xff]
        %v1060 = vld [vmem:[%s1052 + $0x38] sm:$0xff]
        %v1062 = vsel %vm636, %v1051, 0
        %1064 = vmatprep.subr.bf16.mxu0 0
        %1065 = vmatpush1.bf16.msra.mxu0 %v1062
        %1066 = vmatprep.subr.bf16.mxu0 0
        %1067 = vmatpush1.bf16.msra.mxu0 0
        %1068 = vmatprep.subr.bf16.mxu0 0
        %1069 = vmatpush1.bf16.msra.mxu0 0
        %1070 = vmatprep.subr.bf16.mxu0 0
        %1071 = vmatpush1.bf16.msra.mxu0 0
        %1072 = vmatprep.subr.bf16.mxu0 0
        %1073 = vmatpush1.bf16.msra.mxu0 0
        %1074 = vmatprep.subr.bf16.mxu0 0
        %1075 = vmatpush1.bf16.msra.mxu0 0
        %1076 = vmatprep.subr.bf16.mxu0 0
        %1077 = vmatpush1.bf16.msra.mxu0 0
        %1078 = vmatprep.subr.bf16.mxu0 0
        %1079 = vmatpush1.bf16.msra.mxu0 0
        %1080 = vmatprep.subr.bf16.mxu0 0
        %1081 = vmatpush1.bf16.msra.mxu0 0
        %1082 = vmatprep.subr.bf16.mxu0 0
        %1083 = vmatpush1.bf16.msra.mxu0 0
        %1084 = vmatprep.subr.bf16.mxu0 0
        %1085 = vmatpush1.bf16.msra.mxu0 0
        %1086 = vmatprep.subr.bf16.mxu0 0
        %1087 = vmatpush1.bf16.msra.mxu0 0
        %1088 = vmatprep.subr.bf16.mxu0 0
        %1089 = vmatpush1.bf16.msra.mxu0 0
        %1090 = vmatprep.subr.bf16.mxu0 0
        %1091 = vmatpush1.bf16.msra.mxu0 0
        %1092 = vmatprep.subr.bf16.mxu0 0
        %1093 = vmatpush1.bf16.msra.mxu0 0
        %1094 = vmatprep.subr.bf16.mxu0 0
        %1095 = vmatpush1.bf16.msra.mxu0 0
        %1096 = vmatprep.mubr.bf16.mxu0 0
        %1097 = vmatmul.mubr.bf16.gmra.mrb[0].mxu0 %v613
        %v1098 = vpop.f32.mrb[0].mxu0
        %v1099 = vadd.f32 0.0, %v1098
        %v1100 = vpop.f32.mrb[0].mxu0
        %v1101 = vpop.f32.mrb[0].mxu0
        %v1102 = vadd.f32 0.0, %v1101
        %v1103 = vpop.f32.mrb[0].mxu0
        %1104 = vmatprep.mubr.bf16.mxu0 0
        %1105 = vmatmul.mubr.bf16.gmra.mrb[0].mxu0 %v616
        %v1106 = vpop.f32.mrb[0].mxu0
        %v1107 = vadd.f32 0.0, %v1106
        %v1108 = vpop.f32.mrb[0].mxu0
        %v1109 = vpop.f32.mrb[0].mxu0
        %v1110 = vadd.f32 0.0, %v1109
        %v1111 = vpop.f32.mrb[0].mxu0
        %1112 = vmatprep.mubr.bf16.mxu0 0
        %1113 = vmatmul.mubr.bf16.gmra.mrb[0].mxu0 %v619
        %v1114 = vpop.f32.mrb[0].mxu0
        %v1115 = vadd.f32 0.0, %v1114
        %v1116 = vpop.f32.mrb[0].mxu0
        %v1117 = vpop.f32.mrb[0].mxu0
        %v1118 = vadd.f32 0.0, %v1117
        %v1119 = vpop.f32.mrb[0].mxu0
        %1120 = vmatprep.mubr.bf16.mxu0 0
        %1121 = vmatmul.mubr.bf16.gmra.mrb[0].mxu0 %v622
        %v1122 = vpop.f32.mrb[0].mxu0
        %v1123 = vadd.f32 0.0, %v1122
        %v1124 = vpop.f32.mrb[0].mxu0
        %v1125 = vpop.f32.mrb[0].mxu0
        %v1126 = vadd.f32 0.0, %v1125
        %v1127 = vpop.f32.mrb[0].mxu0
        %1128 = vmatprep.mubr.bf16.mxu0 0
        %1129 = vmatmul.mubr.bf16.gmra.mrb[0].mxu0 %v625
        %v1130 = vpop.f32.mrb[0].mxu0
        %v1131 = vadd.f32 0.0, %v1130
        %v1132 = vpop.f32.mrb[0].mxu0
        %v1133 = vpop.f32.mrb[0].mxu0
        %v1134 = vadd.f32 0.0, %v1133
        %v1135 = vpop.f32.mrb[0].mxu0
        %1136 = vmatprep.mubr.bf16.mxu0 0
        %1137 = vmatmul.mubr.bf16.gmra.mrb[0].mxu0 %v628
        %v1138 = vpop.f32.mrb[0].mxu0
        %v1139 = vadd.f32 0.0, %v1138
        %v1140 = vpop.f32.mrb[0].mxu0
        %v1141 = vpop.f32.mrb[0].mxu0
        %v1142 = vadd.f32 0.0, %v1141
        %v1143 = vpop.f32.mrb[0].mxu0
        %1144 = vmatprep.mubr.bf16.mxu0 0
        %1145 = vmatmul.mubr.bf16.gmra.mrb[0].mxu0 %v631
        %v1146 = vpop.f32.mrb[0].mxu0
        %v1147 = vadd.f32 0.0, %v1146
        %v1148 = vpop.f32.mrb[0].mxu0
        %v1149 = vpop.f32.mrb[0].mxu0
        %v1150 = vadd.f32 0.0, %v1149
        %v1151 = vpop.f32.mrb[0].mxu0
        %1152 = vmatprep.mubr.bf16.mxu0 0
        %1153 = vmatmul.mubr.bf16.gmra.mrb[0].mxu0 %v634
        %v1154 = vpop.f32.mrb[0].mxu0
        %v1155 = vadd.f32 0.0, %v1154
        %v1156 = vpop.f32.mrb[0].mxu0
        %v1157 = vpop.f32.mrb[0].mxu0
        %v1158 = vadd.f32 0.0, %v1157
        %v1159 = vpop.f32.mrb[0].mxu0
        %1160 = vdwg.mxu0
        %1161 = vmax.xlane.f32.xlu0 %v1099
        %v1162 = vpop.xlane.xlu0 %1161
        %1163 = vmax.xlane.f32.xlu0 %v1102
        %v1164 = vpop.xlane.xlu0 %1163
        %1165 = vmax.xlane.f32.xlu0 %v1107
        %v1166 = vpop.xlane.xlu0 %1165
        %1167 = vmax.xlane.f32.xlu0 %v1110
        %v1168 = vpop.xlane.xlu0 %1167
        %1169 = vmax.xlane.f32.xlu0 %v1115
        %v1170 = vpop.xlane.xlu0 %1169
        %1171 = vmax.xlane.f32.xlu0 %v1118
        %v1172 = vpop.xlane.xlu0 %1171
        %1173 = vmax.xlane.f32.xlu0 %v1123
        %v1174 = vpop.xlane.xlu0 %1173
        %1175 = vmax.xlane.f32.xlu0 %v1126
        %v1176 = vpop.xlane.xlu0 %1175
        %1177 = vmax.xlane.f32.xlu0 %v1131
        %v1178 = vpop.xlane.xlu0 %1177
        %1179 = vmax.xlane.f32.xlu0 %v1134
        %v1180 = vpop.xlane.xlu0 %1179
        %1181 = vmax.xlane.f32.xlu0 %v1139
        %v1182 = vpop.xlane.xlu0 %1181
        %1183 = vmax.xlane.f32.xlu0 %v1142
        %v1184 = vpop.xlane.xlu0 %1183
        %1185 = vmax.xlane.f32.xlu0 %v1147
        %v1186 = vpop.xlane.xlu0 %1185
        %1187 = vmax.xlane.f32.xlu0 %v1150
        %v1188 = vpop.xlane.xlu0 %1187
        %1189 = vmax.xlane.f32.xlu0 %v1155
        %v1190 = vpop.xlane.xlu0 %1189
        %1191 = vmax.xlane.f32.xlu0 %v1158
        %v1192 = vpop.xlane.xlu0 %1191
        %v1193 = vmax.f32 %v738, %v1162
        %v1194 = vmax.f32 %v740, %v1164
        %v1195 = vmax.f32 %v742, %v1166
        %v1196 = vmax.f32 %v744, %v1168
        %v1197 = vmax.f32 %v746, %v1170
        %v1198 = vmax.f32 %v748, %v1172
        %v1199 = vmax.f32 %v750, %v1174
        %v1200 = vmax.f32 %v752, %v1176
        %v1201 = vmax.f32 %v754, %v1178
        %v1202 = vmax.f32 %v756, %v1180
        %v1203 = vmax.f32 %v758, %v1182
        %v1204 = vmax.f32 %v760, %v1184
        %v1205 = vmax.f32 %v762, %v1186
        %v1206 = vmax.f32 %v764, %v1188
        %v1207 = vmax.f32 %v766, %v1190
        %v1208 = vmax.f32 %v768, %v1192
        %v1209 = vsub.f32 %v738, %v1193
        %v1210 = vsub.f32 %v740, %v1194
        %v1211 = vsub.f32 %v742, %v1195
        %v1212 = vsub.f32 %v744, %v1196
        %v1213 = vsub.f32 %v746, %v1197
        %v1214 = vsub.f32 %v748, %v1198
        %v1215 = vsub.f32 %v750, %v1199
        %v1216 = vsub.f32 %v752, %v1200
        %v1217 = vsub.f32 %v754, %v1201
        %v1218 = vsub.f32 %v756, %v1202
        %v1219 = vsub.f32 %v758, %v1203
        %v1220 = vsub.f32 %v760, %v1204
        %v1221 = vsub.f32 %v762, %v1205
        %v1222 = vsub.f32 %v764, %v1206
        %v1223 = vsub.f32 %v766, %v1207
        %v1224 = vsub.f32 %v768, %v1208
        %v1225 = vmul.f32 %v1209, 1.442695
        %v1226 = vpow.pop %v1225
        %v1227 = vmul.f32 %v1210, 1.442695
        %v1228 = vpow.pop %v1227
        %v1229 = vmul.f32 %v1211, 1.442695
        %v1230 = vpow.pop %v1229
        %v1231 = vmul.f32 %v1212, 1.442695
        %v1232 = vpow.pop %v1231
        %v1233 = vmul.f32 %v1213, 1.442695
        %v1234 = vpow.pop %v1233
        %v1235 = vmul.f32 %v1214, 1.442695
        %v1236 = vpow.pop %v1235
        %v1237 = vmul.f32 %v1215, 1.442695
        %v1238 = vpow.pop %v1237
        %v1239 = vmul.f32 %v1216, 1.442695
        %v1240 = vpow.pop %v1239
        %v1241 = vmul.f32 %v1217, 1.442695
        %v1242 = vpow.pop %v1241
        %v1243 = vmul.f32 %v1218, 1.442695
        %v1244 = vpow.pop %v1243
        %v1245 = vmul.f32 %v1219, 1.442695
        %v1246 = vpow.pop %v1245
        %v1247 = vmul.f32 %v1220, 1.442695
        %v1248 = vpow.pop %v1247
        %v1249 = vmul.f32 %v1221, 1.442695
        %v1250 = vpow.pop %v1249
        %v1251 = vmul.f32 %v1222, 1.442695
        %v1252 = vpow.pop %v1251
        %v1253 = vmul.f32 %v1223, 1.442695
        %v1254 = vpow.pop %v1253
        %v1255 = vmul.f32 %v1224, 1.442695
        %v1256 = vpow.pop %v1255
        %v1257 = vsub.f32 %v1099, %v1193
        %v1258 = vsub.f32 %v1102, %v1194
        %v1259 = vsub.f32 %v1107, %v1195
        %v1260 = vsub.f32 %v1110, %v1196
        %v1261 = vsub.f32 %v1115, %v1197
        %v1262 = vsub.f32 %v1118, %v1198
        %v1263 = vsub.f32 %v1123, %v1199
        %v1264 = vsub.f32 %v1126, %v1200
        %v1265 = vsub.f32 %v1131, %v1201
        %v1266 = vsub.f32 %v1134, %v1202
        %v1267 = vsub.f32 %v1139, %v1203
        %v1268 = vsub.f32 %v1142, %v1204
        %v1269 = vsub.f32 %v1147, %v1205
        %v1270 = vsub.f32 %v1150, %v1206
        %v1271 = vsub.f32 %v1155, %v1207
        %v1272 = vsub.f32 %v1158, %v1208
        %v1273 = vmul.f32 %v1257, 1.442695
        %v1274 = vpow.pop %v1273
        %v1275 = vmul.f32 %v1258, 1.442695
        %v1276 = vpow.pop %v1275
        %v1277 = vmul.f32 %v1259, 1.442695
        %v1278 = vpow.pop %v1277
        %v1279 = vmul.f32 %v1260, 1.442695
        %v1280 = vpow.pop %v1279
        %v1281 = vmul.f32 %v1261, 1.442695
        %v1282 = vpow.pop %v1281
        %v1283 = vmul.f32 %v1262, 1.442695
        %v1284 = vpow.pop %v1283
        %v1285 = vmul.f32 %v1263, 1.442695
        %v1286 = vpow.pop %v1285
        %v1287 = vmul.f32 %v1264, 1.442695
        %v1288 = vpow.pop %v1287
        %v1289 = vmul.f32 %v1265, 1.442695
        %v1290 = vpow.pop %v1289
        %v1291 = vmul.f32 %v1266, 1.442695
        %v1292 = vpow.pop %v1291
        %v1293 = vmul.f32 %v1267, 1.442695
        %v1294 = vpow.pop %v1293
        %v1295 = vmul.f32 %v1268, 1.442695
        %v1296 = vpow.pop %v1295
        %v1297 = vmul.f32 %v1269, 1.442695
        %v1298 = vpow.pop %v1297
        %v1299 = vmul.f32 %v1270, 1.442695
        %v1300 = vpow.pop %v1299
        %v1301 = vmul.f32 %v1271, 1.442695
        %v1302 = vpow.pop %v1301
        %v1303 = vmul.f32 %v1272, 1.442695
        %v1304 = vpow.pop %v1303
        %v1305 = vmul.f32 %v1226, %v913
        %v1306 = vmul.f32 %v1228, %v914
        %v1307 = vmul.f32 %v1230, %v915
        %v1308 = vmul.f32 %v1232, %v916
        %v1309 = vmul.f32 %v1234, %v917
        %v1310 = vmul.f32 %v1236, %v918
        %v1311 = vmul.f32 %v1238, %v919
        %v1312 = vmul.f32 %v1240, %v920
        %v1313 = vmul.f32 %v1242, %v921
        %v1314 = vmul.f32 %v1244, %v922
        %v1315 = vmul.f32 %v1246, %v923
        %v1316 = vmul.f32 %v1248, %v924
        %v1317 = vmul.f32 %v1250, %v925
        %v1318 = vmul.f32 %v1252, %v926
        %v1319 = vmul.f32 %v1254, %v927
        %v1320 = vmul.f32 %v1256, %v928
        %1321 = vadd.xlane.f32.xlu0 %v1274
        %v1322 = vpop.xlane.xlu0 %1321
        %1323 = vadd.xlane.f32.xlu0 %v1276
        %v1324 = vpop.xlane.xlu0 %1323
        %1325 = vadd.xlane.f32.xlu0 %v1278
        %v1326 = vpop.xlane.xlu0 %1325
        %1327 = vadd.xlane.f32.xlu0 %v1280
        %v1328 = vpop.xlane.xlu0 %1327
        %1329 = vadd.xlane.f32.xlu0 %v1282
        %v1330 = vpop.xlane.xlu0 %1329
        %1331 = vadd.xlane.f32.xlu0 %v1284
        %v1332 = vpop.xlane.xlu0 %1331
        %1333 = vadd.xlane.f32.xlu0 %v1286
        %v1334 = vpop.xlane.xlu0 %1333
        %1335 = vadd.xlane.f32.xlu0 %v1288
        %v1336 = vpop.xlane.xlu0 %1335
        %1337 = vadd.xlane.f32.xlu0 %v1290
        %v1338 = vpop.xlane.xlu0 %1337
        %1339 = vadd.xlane.f32.xlu0 %v1292
        %v1340 = vpop.xlane.xlu0 %1339
        %1341 = vadd.xlane.f32.xlu0 %v1294
        %v1342 = vpop.xlane.xlu0 %1341
        %1343 = vadd.xlane.f32.xlu0 %v1296
        %v1344 = vpop.xlane.xlu0 %1343
        %1345 = vadd.xlane.f32.xlu0 %v1298
        %v1346 = vpop.xlane.xlu0 %1345
        %1347 = vadd.xlane.f32.xlu0 %v1300
        %v1348 = vpop.xlane.xlu0 %1347
        %1349 = vadd.xlane.f32.xlu0 %v1302
        %v1350 = vpop.xlane.xlu0 %1349
        %1351 = vadd.xlane.f32.xlu0 %v1304
        %v1352 = vpop.xlane.xlu0 %1351
        %v1353 = vadd.f32 %v1305, %v1322
        %v1354 = vadd.f32 %v1306, %v1324
        %v1355 = vadd.f32 %v1307, %v1326
        %v1356 = vadd.f32 %v1308, %v1328
        %v1357 = vadd.f32 %v1309, %v1330
        %v1358 = vadd.f32 %v1310, %v1332
        %v1359 = vadd.f32 %v1311, %v1334
        %v1360 = vadd.f32 %v1312, %v1336
        %v1361 = vadd.f32 %v1313, %v1338
        %v1362 = vadd.f32 %v1314, %v1340
        %v1363 = vadd.f32 %v1315, %v1342
        %v1364 = vadd.f32 %v1316, %v1344
        %v1365 = vadd.f32 %v1317, %v1346
        %v1366 = vadd.f32 %v1318, %v1348
        %v1367 = vadd.f32 %v1319, %v1350
        %v1368 = vadd.f32 %v1320, %v1352
        %v1369 = vmul.f32 %v1226, %v1034
        %v1370 = vmul.f32 %v1228, %v1035
        %v1371 = vmul.f32 %v1230, %v1036
        %v1372 = vmul.f32 %v1232, %v1037
        %v1373 = vmul.f32 %v1234, %v1038
        %v1374 = vmul.f32 %v1236, %v1039
        %v1375 = vmul.f32 %v1238, %v1040
        %v1376 = vmul.f32 %v1240, %v1041
        %v1377 = vmul.f32 %v1242, %v1042
        %v1378 = vmul.f32 %v1244, %v1043
        %v1379 = vmul.f32 %v1246, %v1044
        %v1380 = vmul.f32 %v1248, %v1045
        %v1381 = vmul.f32 %v1250, %v1046
        %v1382 = vmul.f32 %v1252, %v1047
        %v1383 = vmul.f32 %v1254, %v1048
        %v1384 = vmul.f32 %v1256, %v1049
        %v1385 = vpack.c.bf16 %v1276, %v1274
        %v1386 = vpack.c.bf16 %v1280, %v1278
        %v1387 = vpack.c.bf16 %v1284, %v1282
        %v1388 = vpack.c.bf16 %v1288, %v1286
        %v1389 = vpack.c.bf16 %v1292, %v1290
        %v1390 = vpack.c.bf16 %v1296, %v1294
        %v1391 = vpack.c.bf16 %v1300, %v1298
        %v1392 = vpack.c.bf16 %v1304, %v1302
        %1393 = vmatprep.subr.bf16.mxu0 0
        %1394 = vmatpush1.bf16.msra.mxu0 %v1053
        %1395 = vmatprep.subr.bf16.mxu0 0
        %1396 = vmatpush1.bf16.msra.mxu0 %v1054
        %1397 = vmatprep.subr.bf16.mxu0 0
        %1398 = vmatpush1.bf16.msra.mxu0 %v1055
        %1399 = vmatprep.subr.bf16.mxu0 0
        %1400 = vmatpush1.bf16.msra.mxu0 %v1056
        %1401 = vmatprep.subr.bf16.mxu0 0
        %1402 = vmatpush1.bf16.msra.mxu0 %v1057
        %1403 = vmatprep.subr.bf16.mxu0 0
        %1404 = vmatpush1.bf16.msra.mxu0 %v1058
        %1405 = vmatprep.subr.bf16.mxu0 0
        %1406 = vmatpush1.bf16.msra.mxu0 %v1059
        %1407 = vmatprep.subr.bf16.mxu0 0
        %1408 = vmatpush1.bf16.msra.mxu0 %v1060
        %1409 = vmatprep.subr.bf16.mxu0 0
        %1410 = vmatpush1.bf16.msra.mxu0 0
        %1411 = vmatprep.subr.bf16.mxu0 0
        %1412 = vmatpush1.bf16.msra.mxu0 0
        %1413 = vmatprep.subr.bf16.mxu0 0
        %1414 = vmatpush1.bf16.msra.mxu0 0
        %1415 = vmatprep.subr.bf16.mxu0 0
        %1416 = vmatpush1.bf16.msra.mxu0 0
        %1417 = vmatprep.subr.bf16.mxu0 0
        %1418 = vmatpush1.bf16.msra.mxu0 0
        %1419 = vmatprep.subr.bf16.mxu0 0
        %1420 = vmatpush1.bf16.msra.mxu0 0
        %1421 = vmatprep.subr.bf16.mxu0 0
        %1422 = vmatpush1.bf16.msra.mxu0 0
        %1423 = vmatprep.subr.bf16.mxu0 0
        %1424 = vmatpush1.bf16.msra.mxu0 0
        %1425 = vmatprep.mubr.bf16.mxu0 0
        %1426 = vmatmul.mubr.bf16.gmra.mrb[0].mxu0 %v1385
        %v1427 = vpop.f32.mrb[0].mxu0
        %v1428 = vadd.f32 0.0, %v1427
        %v1429 = vpop.f32.mrb[0].mxu0
        %v1430 = vpop.f32.mrb[0].mxu0
        %v1431 = vadd.f32 0.0, %v1430
        %v1432 = vpop.f32.mrb[0].mxu0
        %1433 = vmatprep.mubr.bf16.mxu0 0
        %1434 = vmatmul.mubr.bf16.gmra.mrb[0].mxu0 %v1386
        %v1435 = vpop.f32.mrb[0].mxu0
        %v1436 = vadd.f32 0.0, %v1435
        %v1437 = vpop.f32.mrb[0].mxu0
        %v1438 = vpop.f32.mrb[0].mxu0
        %v1439 = vadd.f32 0.0, %v1438
        %v1440 = vpop.f32.mrb[0].mxu0
        %1441 = vmatprep.mubr.bf16.mxu0 0
        %1442 = vmatmul.mubr.bf16.gmra.mrb[0].mxu0 %v1387
        %v1443 = vpop.f32.mrb[0].mxu0
        %v1444 = vadd.f32 0.0, %v1443
        %v1445 = vpop.f32.mrb[0].mxu0
        %v1446 = vpop.f32.mrb[0].mxu0
        %v1447 = vadd.f32 0.0, %v1446
        %v1448 = vpop.f32.mrb[0].mxu0
        %1449 = vmatprep.mubr.bf16.mxu0 0
        %1450 = vmatmul.mubr.bf16.gmra.mrb[0].mxu0 %v1388
        %v1451 = vpop.f32.mrb[0].mxu0
        %v1452 = vadd.f32 0.0, %v1451
        %v1453 = vpop.f32.mrb[0].mxu0
        %v1454 = vpop.f32.mrb[0].mxu0
        %v1455 = vadd.f32 0.0, %v1454
        %v1456 = vpop.f32.mrb[0].mxu0
        %1457 = vmatprep.mubr.bf16.mxu0 0
        %1458 = vmatmul.mubr.bf16.gmra.mrb[0].mxu0 %v1389
        %v1459 = vpop.f32.mrb[0].mxu0
        %v1460 = vadd.f32 0.0, %v1459
        %v1461 = vpop.f32.mrb[0].mxu0
        %v1462 = vpop.f32.mrb[0].mxu0
        %v1463 = vadd.f32 0.0, %v1462
        %v1464 = vpop.f32.mrb[0].mxu0
        %1465 = vmatprep.mubr.bf16.mxu0 0
        %1466 = vmatmul.mubr.bf16.gmra.mrb[0].mxu0 %v1390
        %v1467 = vpop.f32.mrb[0].mxu0
        %v1468 = vadd.f32 0.0, %v1467
        %v1469 = vpop.f32.mrb[0].mxu0
        %v1470 = vpop.f32.mrb[0].mxu0
        %v1471 = vadd.f32 0.0, %v1470
        %v1472 = vpop.f32.mrb[0].mxu0
        %1473 = vmatprep.mubr.bf16.mxu0 0
        %1474 = vmatmul.mubr.bf16.gmra.mrb[0].mxu0 %v1391
        %v1475 = vpop.f32.mrb[0].mxu0
        %v1476 = vadd.f32 0.0, %v1475
        %v1477 = vpop.f32.mrb[0].mxu0
        %v1478 = vpop.f32.mrb[0].mxu0
        %v1479 = vadd.f32 0.0, %v1478
        %v1480 = vpop.f32.mrb[0].mxu0
        %1481 = vmatprep.mubr.bf16.mxu0 0
        %1482 = vmatmul.mubr.bf16.gmra.mrb[0].mxu0 %v1392
        %v1483 = vpop.f32.mrb[0].mxu0
        %v1484 = vadd.f32 0.0, %v1483
        %v1485 = vpop.f32.mrb[0].mxu0
        %v1486 = vpop.f32.mrb[0].mxu0
        %v1487 = vadd.f32 0.0, %v1486
        %v1488 = vpop.f32.mrb[0].mxu0
        %1489 = vdwg.mxu0
        %v1490 = vadd.f32 %v1369, %v1428
        %v1491 = vadd.f32 %v1370, %v1431
        %v1492 = vadd.f32 %v1371, %v1436
        %v1493 = vadd.f32 %v1372, %v1439
        %v1494 = vadd.f32 %v1373, %v1444
        %v1495 = vadd.f32 %v1374, %v1447
        %v1496 = vadd.f32 %v1375, %v1452
        %v1497 = vadd.f32 %v1376, %v1455
        %v1498 = vadd.f32 %v1377, %v1460
        %v1499 = vadd.f32 %v1378, %v1463
        %v1500 = vadd.f32 %v1379, %v1468
        %v1501 = vadd.f32 %v1380, %v1471
        %v1502 = vadd.f32 %v1381, %v1476
        %v1503 = vadd.f32 %v1382, %v1479
        %v1504 = vadd.f32 %v1383, %v1484
        %v1505 = vadd.f32 %v1384, %v1487
        %v1506 = vrcp.pop %v1353
        %v1507 = vrcp.pop %v1354
        %v1508 = vrcp.pop %v1355
        %v1509 = vrcp.pop %v1356
        %v1510 = vrcp.pop %v1357
        %v1511 = vrcp.pop %v1358
        %v1512 = vrcp.pop %v1359
        %v1513 = vrcp.pop %v1360
        %v1514 = vrcp.pop %v1361
        %v1515 = vrcp.pop %v1362
        %v1516 = vrcp.pop %v1363
        %v1517 = vrcp.pop %v1364
        %v1518 = vrcp.pop %v1365
        %v1519 = vrcp.pop %v1366
        %v1520 = vrcp.pop %v1367
        %v1521 = vrcp.pop %v1368
        %v1522 = vmul.f32 %v1490, %v1506
        %v1523 = vmul.f32 %v1491, %v1507
        %v1524 = vmul.f32 %v1492, %v1508
        %v1525 = vmul.f32 %v1493, %v1509
        %v1526 = vmul.f32 %v1494, %v1510
        %v1527 = vmul.f32 %v1495, %v1511
        %v1528 = vmul.f32 %v1496, %v1512
        %v1529 = vmul.f32 %v1497, %v1513
        %v1530 = vmul.f32 %v1498, %v1514
        %v1531 = vmul.f32 %v1499, %v1515
        %v1532 = vmul.f32 %v1500, %v1516
        %v1533 = vmul.f32 %v1501, %v1517
        %v1534 = vmul.f32 %v1502, %v1518
        %v1535 = vmul.f32 %v1503, %v1519
        %v1536 = vmul.f32 %v1504, %v1520
        %v1537 = vmul.f32 %v1505, %v1521
        %v1538 = vld [vmem:[%s3] sm:$0xf]
        %v1539 = vpack.c.bf16 %v1523, %v1522
        %v1540 = vpack.c.bf16 %v1525, %v1524
        %v1541 = vpack.c.bf16 %v1527, %v1526
        %v1542 = vpack.c.bf16 %v1529, %v1528
        %v1543 = vpack.c.bf16 %v1531, %v1530
        %v1544 = vpack.c.bf16 %v1533, %v1532
        %v1545 = vpack.c.bf16 %v1535, %v1534
        %v1546 = vpack.c.bf16 %v1537, %v1536
        %v1547 = vld [vmem:[%s4] sm:$0xff]
        %1549 = vset.pattern.permute.xlu0 0
        %1550 = vperm.xlu0 %1549, %v1547
        %v1551 = vpop.permute.xlu0 %1550
        %v1554 = vsel %vm611, %v1538, 0
        %v1557 = vsel %vm611, %v1539, 0
        %v1560 = vsel %vm611, %v1540, 0
        %v1563 = vsel %vm611, %v1541, 0
        %v1566 = vsel %vm611, %v1542, 0
        %v1569 = vsel %vm611, %v1543, 0
        %v1572 = vsel %vm611, %v1544, 0
        %v1575 = vsel %vm611, %v1545, 0
        %v1578 = vsel %vm611, %v1546, 0
        %1580 = vmatprep.subr.bf16.mxu0 0
        %1581 = vmatpush1.bf16.xpose.msra.mxu0 %v1557
        %1582 = vmatprep.subr.bf16.mxu0 0
        %1583 = vmatpush1.bf16.xpose.msra.mxu0 %v1560
        %1584 = vmatprep.subr.bf16.mxu0 0
        %1585 = vmatpush1.bf16.xpose.msra.mxu0 %v1563
        %1586 = vmatprep.subr.bf16.mxu0 0
        %1587 = vmatpush1.bf16.xpose.msra.mxu0 %v1566
        %1588 = vmatprep.subr.bf16.mxu0 0
        %1589 = vmatpush1.bf16.xpose.msra.mxu0 %v1569
        %1590 = vmatprep.subr.bf16.mxu0 0
        %1591 = vmatpush1.bf16.xpose.msra.mxu0 %v1572
        %1592 = vmatprep.subr.bf16.mxu0 0
        %1593 = vmatpush1.bf16.xpose.msra.mxu0 %v1575
        %1594 = vmatprep.subr.bf16.mxu0 0
        %1595 = vmatpush1.bf16.xpose.msra.mxu0 %v1578
        %1596 = vmatprep.subr.bf16.mxu0 0
        %1597 = vmatpush1.bf16.xpose.msra.mxu0 0
        %1598 = vmatprep.subr.bf16.mxu0 0
        %1599 = vmatpush1.bf16.xpose.msra.mxu0 0
        %1600 = vmatprep.subr.bf16.mxu0 0
        %1601 = vmatpush1.bf16.xpose.msra.mxu0 0
        %1602 = vmatprep.subr.bf16.mxu0 0
        %1603 = vmatpush1.bf16.xpose.msra.mxu0 0
        %1604 = vmatprep.subr.bf16.mxu0 0
        %1605 = vmatpush1.bf16.xpose.msra.mxu0 0
        %1606 = vmatprep.subr.bf16.mxu0 0
        %1607 = vmatpush1.bf16.xpose.msra.mxu0 0
        %1608 = vmatprep.subr.bf16.mxu0 0
        %1609 = vmatpush1.bf16.xpose.msra.mxu0 0
        %1610 = vmatprep.subr.bf16.mxu0 0
        %1611 = vmatpush1.bf16.xpose.msra.mxu0 0
        %1612 = vmatprep.mubr.bf16.mxu0 0
        %1613 = vmatmul.mubr.bf16.gmra.mrb[0].mxu0 %v1554
        %v1614 = vpop.f32.mrb[0].mxu0
        %v1615 = vadd.f32 %v1551, %v1614
        %v1616 = vpop.f32.mrb[0].mxu0
        %v1617 = vpop.f32.mrb[0].mxu0
        %v1618 = vpop.f32.mrb[0].mxu0
        %1619 = vdwg.mxu0
        %1620 = vst [vmem:[%s231] sm:$0xff] %v1615
        %s1621 = sand.u32 %s151, 1
        %s1622 = scalar_lea.sflag [#allocation6], %s1621
        %s1623 = sand.u32 %s151, 1
        %s1624 = smul.addr %s1623, 8
        %s1625 = scalar_lea.vmem [#allocation5], %s1624
        // Predicated region
        $region45: #{tpu_custom_call.1} parent=39 // pred_check
          %p1626 = pneg %p161
        $region46: #{tpu_custom_call.1} parent=39 // pred_check_branch
          %1628 = sbr.rel (%p1626) target = $region48
        $region47: #{tpu_custom_call.1} parent=39 // pred_region
          %s1630 = ssub.s32 128, 128
          %1631 = vsyncadd %s1622, %s1630
          %s1632 = smul.addr %s23, 2
          %s1633 = sadd.s32 %s24, %s1632
          %s1634 = smul.addr %s1633, 128
          %s1635 = scalar_lea.hbm %s5, %s1634
          %s1637 = sshll.u32 %s1625, 4
          %s1638 = int_to_ptr.vmem [resolvable:$true] %s1637
          %1640 = dma.vmem_to_hbm [thread:$0]  %s1638, 128, %s1635, %s1622
        $region48: #{tpu_custom_call.1} parent=39 // pred_fallthru
          _
      $region40: #{tpu_custom_call.1} parent=5 // pred_fallthru
        _
      %p1641 = scmp.le.s32.totalorder 2, %s14
      // Predicated region
      $region49: #{tpu_custom_call.1} parent=5 // pred_check
        %p1642 = pneg %p1641
      $region50: #{tpu_custom_call.1} parent=5 // pred_check_branch
        %1644 = sbr.rel (%p1642) target = $region52
      $region51: #{tpu_custom_call.1} parent=5 // pred_region
        %s1645 = ssub.s32 %s14, 2
        // Predicated region
        $region53: #{tpu_custom_call.1} parent=51 // pred_check
          %p1646 = pneg %p167
        $region54: #{tpu_custom_call.1} parent=51 // pred_check_branch
          %1648 = sbr.rel (%p1646) target = $region56
        $region55: #{tpu_custom_call.1} parent=51 // pred_region
          %s1649 = sand.u32 %s152, 1
          %s1650 = scalar_lea.sflag [#allocation6], %s1649
          %s1651 = sand.u32 %s152, 1
          %s1652 = smul.addr %s1651, 8
          %s1653 = scalar_lea.vmem [#allocation5], %s1652
          %1654 = dma.done %s1650, 128
        $region56: #{tpu_custom_call.1} parent=51 // pred_fallthru
          _
      $region52: #{tpu_custom_call.1} parent=5 // pred_fallthru
        _
    $region6: #{tpu_custom_call.1} parent=1 // loop_footer
      %s18 = sadd.s32 1, %s14
    $region7: #{tpu_custom_call.1} parent=1 // loop_footer_branch
      %13 = sbr.rel target = $region3
    $region8: #{tpu_custom_call.1} parent=1 // loop_exit
      _
    %1655 = vsyncpa [#allocation6], 1
    %s1656 = scalar_lea.sflag [#allocation6], 1
    %1657 = vsyncpa %s1656, 1

</llo_original>
